<compile_context>
chip_gen: v7x
topology: tpu7x:2x2x1
jax: 0.10.0
libtpu: 0.0.40
codegen_flags: <defaults>
</compile_context>

<pallas_src>
import functools

import jax
import jax.numpy as jnp
from jax import lax
from jax.experimental import pallas as pl
from jax.experimental.pallas import tpu as pltpu

LANE = 128


def _round_up(n, m):
    return ((n + m - 1) // m) * m


def _layernorm(x, gamma, beta, eps):
    """Plain LayerNorm over the last axis (used by both the kernel and the reference)."""
    mu = jnp.mean(x, axis=-1, keepdims=True)
    var = jnp.mean(jnp.square(x - mu), axis=-1, keepdims=True)
    return (x - mu) * lax.rsqrt(var + eps) * gamma + beta


def convblock_kernel(x_ref, ln_g, ln_b, w_ref, b_ref,
                     rln_g, rln_b, rw_ref, rb_ref, scale_ref,
                     o_ref, buf, pool,
                     *, eps, K, PAD, L, cip, cop, halo):
    """Fused ConvBlock forward on one (M, C) tile, M = NB * L flattened batch rows.

    x_ref   : (M, Cin)        input dtype, NARROW (real channels only)
    w_ref   : (K*cip, Cout)   bf16 im2col-fused conv weight (tap-major rows, channel-padded rows zero)
    rw_ref  : (3*cop, Cout)   bf16 fused residual-conv weight
    o_ref   : (Mh, Cout)      Mh = M // 2 (after MaxPool1d(2, 2)), NARROW
    buf     : VMEM (M + 2*halo, max(cip, cop)) bf16 — merged tap-staging scratch (both convs)
    pool    : VMEM (M, Cout) out-dtype — MaxPool staging
    """
    M, cin = x_ref.shape
    Mh, cout = o_ref.shape
    H = halo                                                       # 16-row aligned (bf16 tile)
    cmax = buf.shape[1]

    # Zero the lanes that padded / fused-weight zero-rows will read back: when channel padding
    # exists the whole (tiny) buffer is cleared so no stale (possibly NaN) VMEM can reach the
    # matmul via a padded column; otherwise only the halo rows are belt-and-braces cleared.
    # (Done every step, not under pl.when(step==0): under 'parallel' megacore sharding a core
    #  may never see step 0.)
    if cin < cip or cout < cop:
        buf[...] = jnp.zeros(buf.shape, buf.dtype)
    else:
        buf[pl.ds(0, H), :] = jnp.zeros((H, cmax), buf.dtype)
        buf[pl.ds(H + M, H), :] = jnp.zeros((H, cmax), buf.dtype)

    # Per-row position inside its length-L sequence (identical every grid step -> in-kernel iota
    # instead of a DMA'd (M,1) input).
    l_idx = lax.broadcasted_iota(jnp.int32, (M, 1), 0) % L

    def conv_same(act_bf16, width, w_fused, bias, taps, pad):
        """'same' Conv1d along rows as ONE fused bf16 MXU matmul (f32 accumulation).

        `act_bf16` (M, c_real) is staged once at the tile-aligned offset H; the `taps` shifted
        stride-1 windows of lane-padded width `width` are read back, row-masked (per-sequence
        'same' zero padding — also guards cross-sequence bleed inside the tile), lane-concatenated
        into an (M, taps*width) im2col tile and contracted against the fused weight.
        """
        buf[pl.ds(H, M), :act_bf16.shape[1]] = act_bf16            # H is a static multiple of 16
        views = []
        for k in range(taps):
            s = k - pad                                            # tap reads in[l + s]
            v = buf[pl.ds(H + s, M), :width]
            if s < 0:                                              # no predecessor when l < -s
                v = jnp.where(l_idx >= -s, v, jnp.zeros_like(v))
            elif s > 0:                                            # no successor when l >= L - s
                v = jnp.where(l_idx < L - s, v, jnp.zeros_like(v))
            views.append(v)
        cols = views[0] if taps == 1 else jnp.concatenate(views, axis=-1)
        return jnp.dot(cols, w_fused, preferred_element_type=jnp.float32) + bias

    x = x_ref[...].astype(jnp.float32)                             # (M, Cin) narrow, f32 math

    # ---- LayerNorm(Cin) -> ReLU (exact, unmasked: value is narrow) ----
    a = jnp.maximum(_layernorm(x, ln_g[...], ln_b[...], eps), 0.0)

    # ---- Conv1d(Cin -> Cout, K, stride 1, pad PAD); Dropout = identity at inference ----
    # TODO(synk): training-mode dropout and stride != 1 are not modeled.
    y = conv_same(a.astype(buf.dtype), cip, w_ref[...], b_ref[...], K, PAD)

    # ---- residual: LayerNorm(Cout) -> ReLU -> Conv1d(3, 'same') -> *scale -> add ----
    ar = jnp.maximum(_layernorm(y, rln_g[...], rln_b[...], eps), 0.0)
    r = conv_same(ar.astype(buf.dtype), cop, rw_ref[...], rb_ref[...], 3, 1)
    y = y + r * scale_ref[...]

    # ---- MaxPool1d(kernel=2, stride=2): stage y once, two stride-2 sublane reads ----
    # (A pltpu.roll-based pairwise max would save one strided read; kept as the proven form.)
    pool[...] = y.astype(pool.dtype)
    o_ref[...] = jnp.maximum(pool[pl.ds(0, Mh, 2), :],
                             pool[pl.ds(1, Mh, 2), :]).astype(o_ref.dtype)


def _pick_batch_block(N, L, target_rows=512, grid_multiple=1):
    """NB sequences per grid step: target M = NB*L in the ~128-512 range (amortize per-step
    overhead / MXU fill-drain).  Set grid_multiple=2 on v7x so both TensorCores get work; on
    v5e/v6e (single TC) the largest tile wins even if the grid collapses to 1 step."""
    cands = [d for d in range(1, N + 1)
             if N % d == 0 and (N // d == 1 or (d * L) % 16 == 0)]
    fits = [d for d in cands if d * L <= target_rows] or [min(cands)]
    pref = [d for d in fits if (N // d) % grid_multiple == 0]
    return max(pref or fits)


def convblock_forward(x, p, *, eps, K, PAD, batch_block=None, grid_multiple=1):
    """x: (N, Cin, L) NCL like PyTorch. Returns (N, Cout, L//2) in x.dtype."""
    N, Cin, L = x.shape
    Cout = p["conv_w"].shape[0]
    assert L % 2 == 0
    assert K == 2 * PAD + 1, "kernel assumes the length-preserving conv config (K == 2*PAD + 1)"
    Lp = L // 2

    # Lane-padded widths exist only inside VMEM (tap staging + fused-weight rows).
    Cip = _round_up(Cin, LANE)
    Cop = _round_up(Cout, LANE)
    Cmax = max(Cip, Cop)

    NB = batch_block or _pick_batch_block(N, L, grid_multiple=grid_multiple)
    assert N % NB == 0
    G = N // NB
    M, Mh = NB * L, NB * Lp
    assert G == 1 or M % 16 == 0, "NB*L must be a multiple of 16 when the grid has > 1 step"
    # Halo rounded to the bf16 sublane tile (16 rows) -> tile-aligned staging store.
    H = _round_up(max(PAD, K - 1 - PAD, 1), 16)

    f32 = jnp.float32
    out_dtype = x.dtype

    # ---- operand prep: NARROW HBM layouts (no lane-padded copies in HBM) ----
    x2 = jnp.transpose(x, (0, 2, 1)).reshape(N * L, Cin)           # (N*L, Cin)

    def vec(v, n):
        return v.astype(f32).reshape(1, n)

    # im2col-fused weights (tap-major rows, channel-padded rows are zero), bf16 MXU operands.
    w_kio = jnp.transpose(p["conv_w"], (2, 1, 0)).astype(f32)      # (K, Cin, Cout)
    w_fused = (jnp.zeros((K, Cip, Cout), f32).at[:, :Cin, :].set(w_kio)
               .reshape(K * Cip, Cout).astype(jnp.bfloat16))
    rw_kio = jnp.transpose(p["res_conv_w"], (2, 1, 0)).astype(f32)  # (3, Cout, Cout)
    rw_fused = (jnp.zeros((3, Cop, Cout), f32).at[:, :Cout, :].set(rw_kio)
                .reshape(3 * Cop, Cout).astype(jnp.bfloat16))

    args = (x2, vec(p["ln_g"], Cin), vec(p["ln_b"], Cin),
            w_fused, vec(p["conv_b"], Cout),
            vec(p["rln_g"], Cout), vec(p["rln_b"], Cout),
            rw_fused, vec(p["res_conv_b"], Cout),
            vec(p["scale"], Cout))

    def const_spec(shape, nbytes):
        # Constant-index blocks never need double buffering; single-buffer them once they are
        # big enough to matter (mostly a v7x 64 MiB VMEM concern; tiny vectors keep the default).
        if nbytes > 2 * 1024 * 1024:
            return pl.BlockSpec(shape, lambda n: (0, 0), pipeline_mode=pl.Buffered(1))
        return pl.BlockSpec(shape, lambda n: (0, 0))

    w_bytes = int(w_fused.size) * 2
    rw_bytes = int(rw_fused.size) * 2
    in_specs = [
        pl.BlockSpec((M, Cin), lambda n: (n, 0)),                  # NB narrow batch rows / step
        const_spec((1, Cin), 0), const_spec((1, Cin), 0),
        const_spec((K * Cip, Cout), w_bytes), const_spec((1, Cout), 0),
        const_spec((1, Cout), 0), const_spec((1, Cout), 0),
        const_spec((3 * Cop, Cout), rw_bytes), const_spec((1, Cout), 0),
        const_spec((1, Cout), 0),
    ]

    # VMEM budget derived from the actual buffers (double-buffered grid blocks + scratch),
    # generous 2x margin; floor 32 MiB, capped below the v5e/v6e physical 128 MiB.
    out_isz = jnp.dtype(out_dtype).itemsize
    blk_bytes = (2 * M * Cin * x2.dtype.itemsize
                 + 2 * Mh * Cout * out_isz
                 + 2 * (w_bytes + rw_bytes)
                 + 2 * 8 * (2 * Cin + 5 * Cout) * 4)
    scratch_bytes = (M + 2 * H) * Cmax * 2 + M * Cout * out_isz
    vmem_limit = int(min(100 * 2 ** 20, max(32 * 2 ** 20, 2 * (blk_bytes + scratch_bytes))))

    kernel = functools.partial(convblock_kernel, eps=eps, K=K, PAD=PAD, L=L,
                               cip=Cip, cop=Cop, halo=H)

    out2 = pl.pallas_call(
        kernel,
        out_shape=jax.ShapeDtypeStruct((N * Lp, Cout), out_dtype),
        grid_spec=pltpu.PrefetchScalarGridSpec(
            num_scalar_prefetch=0,
            grid=(G,),
            in_specs=in_specs,
            out_specs=pl.BlockSpec((Mh, Cout), lambda n: (n, 0)),
            scratch_shapes=[pltpu.VMEM((M + 2 * H, Cmax), jnp.bfloat16),   # merged tap scratch
                            pltpu.VMEM((M, Cout), out_dtype)],             # maxpool staging
        ),
        compiler_params=pltpu.CompilerParams(
            dimension_semantics=("parallel",),
            vmem_limit_bytes=vmem_limit,
        ),
    )(*args)

    return jnp.transpose(out2.reshape(N, Lp, Cout), (0, 2, 1))     # (N, Cout, L//2)


# ---------------------------- plain-JAX reference ----------------------------
def ref_forward(x, p, eps, K, PAD):
    """Mirrors the PyTorch forward (eval mode) in f32."""
    N, Cin, L = x.shape
    xt = jnp.transpose(x, (0, 2, 1))
    a = jax.nn.relu(_layernorm(xt, p["ln_g"], p["ln_b"], eps))
    a_ncl = jnp.transpose(a, (0, 2, 1))
    y = lax.conv_general_dilated(a_ncl, p["conv_w"], (1,), [(PAD, PAD)],
                                 dimension_numbers=("NCH", "OIH", "NCH"))
    y = y + p["conv_b"][None, :, None]
    yt = jnp.transpose(y, (0, 2, 1))
    ar = jnp.transpose(jax.nn.relu(_layernorm(yt, p["rln_g"], p["rln_b"], eps)),
                       (0, 2, 1))
    r = lax.conv_general_dilated(ar, p["res_conv_w"], (1,), [(1, 1)],
                                 dimension_numbers=("NCH", "OIH", "NCH"))
    r = r + p["res_conv_b"][None, :, None]
    y = y + r * p["scale"][None, :, None]
    Cout = y.shape[1]
    return jnp.max(y.reshape(N, Cout, L // 2, 2), axis=-1)


if __name__ == "__main__":
    # ConvBlock(in=4, out=8, k=3, stride=1, padding=1, eps=1e-5, dropout=0.1,
    #           residual=True, is_initial=False)
    N, Cin, Cout, L, K, PAD, EPS = 4, 4, 8, 16, 3, 1, 1e-5

    key = jax.random.PRNGKey(0)
    keys = jax.random.split(key, 9)
    params = {
        "ln_g":       jax.random.normal(keys[0], (Cin,), jnp.float32) * 0.1 + 1.0,
        "ln_b":       jax.random.normal(keys[1], (Cin,), jnp.float32) * 0.1,
        "conv_w":     jax.random.normal(keys[2], (Cout, Cin, K), jnp.float32) * 0.2,
        "conv_b":     jax.random.normal(keys[3], (Cout,), jnp.float32) * 0.1,
        "rln_g":      jax.random.normal(keys[4], (Cout,), jnp.float32) * 0.1 + 1.0,
        "rln_b":      jax.random.normal(keys[5], (Cout,), jnp.float32) * 0.1,
        "res_conv_w": jax.random.normal(keys[6], (Cout, Cout, 3), jnp.float32) * 0.2,
        "res_conv_b": jax.random.normal(keys[7], (Cout,), jnp.float32) * 0.1,
        # Module inits scale to zeros; nonzero here so the residual branch is exercised.
        "scale":      jnp.linspace(0.1, 0.8, Cout).astype(jnp.float32),
    }
    x = jax.random.normal(keys[8], (N, Cin, L), jnp.float32)

    ref = ref_forward(x, params, EPS, K, PAD)

    # Default (v5e/v6e style: largest tile, grid collapses to 1 step).
    out = jax.block_until_ready(convblock_forward(x, params, eps=EPS, K=K, PAD=PAD))
    assert out.shape == (N, Cout, L // 2), out.shape
    err = float(jnp.max(jnp.abs(out - ref)))
    # bf16 MXU operands with f32 accumulation vs a pure-f32 reference -> looser tolerance.
    assert jnp.allclose(out, ref, atol=6e-2, rtol=6e-2), f"max abs err {err}"

    # v7x-style tiling (even grid so both TensorCores get work) — exercises the multi-step path.
    out2 = jax.block_until_ready(
        convblock_forward(x, params, eps=EPS, K=K, PAD=PAD, grid_multiple=2))
    err2 = float(jnp.max(jnp.abs(out2 - ref)))
    assert jnp.allclose(out2, ref, atol=6e-2, rtol=6e-2), f"max abs err {err2}"

    print("KERNEL_OK")
</pallas_src>

<mosaic_0001>
module attributes {stable_mosaic.version = 11 : i64} {
  func.func @convblock_kernel(%arg0: i32, %arg1: memref<64x4xf32, #tpu.memory_space<vmem>>, %arg2: memref<1x4xf32, #tpu.memory_space<vmem>>, %arg3: memref<1x4xf32, #tpu.memory_space<vmem>>, %arg4: memref<384x8xbf16, #tpu.memory_space<vmem>>, %arg5: memref<1x8xf32, #tpu.memory_space<vmem>>, %arg6: memref<1x8xf32, #tpu.memory_space<vmem>>, %arg7: memref<1x8xf32, #tpu.memory_space<vmem>>, %arg8: memref<384x8xbf16, #tpu.memory_space<vmem>>, %arg9: memref<1x8xf32, #tpu.memory_space<vmem>>, %arg10: memref<1x8xf32, #tpu.memory_space<vmem>>, %arg11: memref<32x8xf32, #tpu.memory_space<vmem>>, %arg12: memref<96x128xbf16, #tpu.memory_space<vmem>>, %arg13: memref<64x8xf32, #tpu.memory_space<vmem>>) attributes {dimension_semantics = [#tpu.dimension_semantics<parallel>], iteration_bounds = array<i64: 1>, scalar_prefetch = 0 : i64, scratch_operands = 2 : i64, tpu.core_type = #tpu.core_type<tc>, window_params = [{transform_indices = @transform_0, window_bounds = array<i64: 64, 4>}, {pipeline_mode = #tpu.pipeline_mode<synchronous>, transform_indices = @transform_1, window_bounds = array<i64: 1, 4>}, {pipeline_mode = #tpu.pipeline_mode<synchronous>, transform_indices = @transform_2, window_bounds = array<i64: 1, 4>}, {pipeline_mode = #tpu.pipeline_mode<synchronous>, transform_indices = @transform_3, window_bounds = array<i64: 384, 8>}, {pipeline_mode = #tpu.pipeline_mode<synchronous>, transform_indices = @transform_4, window_bounds = array<i64: 1, 8>}, {pipeline_mode = #tpu.pipeline_mode<synchronous>, transform_indices = @transform_5, window_bounds = array<i64: 1, 8>}, {pipeline_mode = #tpu.pipeline_mode<synchronous>, transform_indices = @transform_6, window_bounds = array<i64: 1, 8>}, {pipeline_mode = #tpu.pipeline_mode<synchronous>, transform_indices = @transform_7, window_bounds = array<i64: 384, 8>}, {pipeline_mode = #tpu.pipeline_mode<synchronous>, transform_indices = @transform_8, window_bounds = array<i64: 1, 8>}, {pipeline_mode = #tpu.pipeline_mode<synchronous>, transform_indices = @transform_9, window_bounds = array<i64: 1, 8>}, {transform_indices = @transform_10, window_bounds = array<i64: 32, 8>}]} {
    %cst = arith.constant 0.000000e+00 : bf16
    %0 = vector.broadcast %cst : bf16 to vector<96x128xbf16>
    %c0 = arith.constant 0 : index
    %c0_0 = arith.constant 0 : index
    %1 = vector.load %arg12[%c0, %c0_0] : memref<96x128xbf16, #tpu.memory_space<vmem>>, vector<96x128xbf16>
    tpu.vector_store %arg12[%c0, %c0_0], %0 {strides = array<i32>} : memref<96x128xbf16, #tpu.memory_space<vmem>>, vector<96x128xbf16>,
    %2 = tpu.iota {dimensions = array<i32: 0>} : vector<64x1xi32>
    %c16_i32 = arith.constant 16 : i32
    %c0_i32 = arith.constant 0 : i32
    %3 = arith.cmpi eq, %c16_i32, %c0_i32 : i32
    %c1_i32 = arith.constant 1 : i32
    %4 = arith.select %3, %c1_i32, %c16_i32 : i32
    %5 = vector.broadcast %4 : i32 to vector<64x1xi32>
    %6 = arith.remsi %2, %5 : vector<64x1xi32>
    %c0_i32_1 = arith.constant 0 : i32
    %7 = vector.broadcast %c0_i32_1 : i32 to vector<64x1xi32>
    %8 = arith.cmpi ne, %6, %7 : vector<64x1xi32>
    %c0_i32_2 = arith.constant 0 : i32
    %9 = vector.broadcast %c0_i32_2 : i32 to vector<64x1xi32>
    %10 = arith.cmpi slt, %6, %9 : vector<64x1xi32>
    %c0_i32_3 = arith.constant 0 : i32
    %11 = arith.cmpi slt, %4, %c0_i32_3 : i32
    %12 = vector.broadcast %11 : i1 to vector<64x1xi1>
    %13 = vector.broadcast %12 : vector<64x1xi1> to vector<64x1xi1>
    %14 = arith.xori %10, %13 : vector<64x1xi1>
    %15 = arith.andi %14, %8 : vector<64x1xi1>
    %16 = vector.broadcast %4 : i32 to vector<64x1xi32>
    %17 = arith.addi %6, %16 : vector<64x1xi32>
    %18 = arith.select %15, %17, %6 : vector<64x1xi1>, vector<64x1xi32>
    %c0_4 = arith.constant 0 : index
    %c0_5 = arith.constant 0 : index
    %19 = vector.load %arg1[%c0_4, %c0_5] : memref<64x4xf32, #tpu.memory_space<vmem>>, vector<64x4xf32>
    %c0_6 = arith.constant 0 : index
    %c0_7 = arith.constant 0 : index
    %20 = vector.load %arg2[%c0_6, %c0_7] : memref<1x4xf32, #tpu.memory_space<vmem>>, vector<1x4xf32>
    %c0_8 = arith.constant 0 : index
    %c0_9 = arith.constant 0 : index
    %21 = vector.load %arg3[%c0_8, %c0_9] : memref<1x4xf32, #tpu.memory_space<vmem>>, vector<1x4xf32>
    %cst_10 = arith.constant dense<0.000000e+00> : vector<64xf32>
    %22 = vector.multi_reduction <add>, %19, %cst_10 [1] : vector<64x4xf32> to vector<64xf32>
    %23 = vector.shape_cast %22 : vector<64xf32> to vector<64x1xf32>
    %cst_11 = arith.constant 4.000000e+00 : f32
    %24 = vector.broadcast %cst_11 : f32 to vector<64x1xf32>
    %25 = arith.divf %23, %24 : vector<64x1xf32>
    %26 = vector.broadcast %25 : vector<64x1xf32> to vector<64x4xf32>
    %27 = arith.subf %19, %26 : vector<64x4xf32>
    %28 = arith.mulf %27, %27 : vector<64x4xf32>
    %cst_12 = arith.constant dense<0.000000e+00> : vector<64xf32>
    %29 = vector.multi_reduction <add>, %28, %cst_12 [1] : vector<64x4xf32> to vector<64xf32>
    %30 = vector.shape_cast %29 : vector<64xf32> to vector<64x1xf32>
    %cst_13 = arith.constant 4.000000e+00 : f32
    %31 = vector.broadcast %cst_13 : f32 to vector<64x1xf32>
    %32 = arith.divf %30, %31 : vector<64x1xf32>
    %33 = vector.broadcast %25 : vector<64x1xf32> to vector<64x4xf32>
    %34 = arith.subf %19, %33 : vector<64x4xf32>
    %cst_14 = arith.constant 9.99999974E-6 : f32
    %35 = vector.broadcast %cst_14 : f32 to vector<64x1xf32>
    %36 = arith.addf %32, %35 : vector<64x1xf32>
    %37 = math.rsqrt %36 : vector<64x1xf32>
    %38 = vector.broadcast %37 : vector<64x1xf32> to vector<64x4xf32>
    %39 = arith.mulf %34, %38 : vector<64x4xf32>
    %40 = vector.broadcast %20 : vector<1x4xf32> to vector<64x4xf32>
    %41 = arith.mulf %39, %40 : vector<64x4xf32>
    %42 = vector.broadcast %21 : vector<1x4xf32> to vector<64x4xf32>
    %43 = arith.addf %41, %42 : vector<64x4xf32>
    %cst_15 = arith.constant 0.000000e+00 : f32
    %44 = vector.broadcast %cst_15 : f32 to vector<64x4xf32>
    %45 = arith.maximumf %43, %44 : vector<64x4xf32>
    %46 = arith.truncf %45 : vector<64x4xf32> to vector<64x4xbf16>
    %c0_16 = arith.constant 0 : index
    %c0_17 = arith.constant 0 : index
    %47 = vector.load %arg4[%c0_16, %c0_17] : memref<384x8xbf16, #tpu.memory_space<vmem>>, vector<384x8xbf16>
    %c0_18 = arith.constant 0 : index
    %c0_19 = arith.constant 0 : index
    %48 = vector.load %arg5[%c0_18, %c0_19] : memref<1x8xf32, #tpu.memory_space<vmem>>, vector<1x8xf32>
    %c16 = arith.constant 16 : index
    %c0_20 = arith.constant 0 : index
    %49 = vector.load %arg12[%c16, %c0_20] : memref<96x128xbf16, #tpu.memory_space<vmem>>, vector<64x4xbf16>
    tpu.vector_store %arg12[%c16, %c0_20], %46 {strides = array<i32>} : memref<96x128xbf16, #tpu.memory_space<vmem>>, vector<64x4xbf16>,
    %c15 = arith.constant 15 : index
    %c0_21 = arith.constant 0 : index
    %50 = vector.load %arg12[%c15, %c0_21] : memref<96x128xbf16, #tpu.memory_space<vmem>>, vector<64x128xbf16>
    %c1_i32_22 = arith.constant 1 : i32
    %51 = vector.broadcast %c1_i32_22 : i32 to vector<64x1xi32>
    %52 = arith.cmpi sge, %18, %51 : vector<64x1xi32>
    %cst_23 = arith.constant 0.000000e+00 : bf16
    %53 = vector.broadcast %cst_23 : bf16 to vector<64x128xbf16>
    %54 = vector.shape_cast %52 : vector<64x1xi1> to vector<64x1xi1>
    %55 = vector.broadcast %54 : vector<64x1xi1> to vector<64x128xi1>
    %56 = arith.select %55, %50, %53 : vector<64x128xi1>, vector<64x128xbf16>
    %c16_24 = arith.constant 16 : index
    %c0_25 = arith.constant 0 : index
    %57 = vector.load %arg12[%c16_24, %c0_25] : memref<96x128xbf16, #tpu.memory_space<vmem>>, vector<64x128xbf16>
    %c17 = arith.constant 17 : index
    %c0_26 = arith.constant 0 : index
    %58 = vector.load %arg12[%c17, %c0_26] : memref<96x128xbf16, #tpu.memory_space<vmem>>, vector<64x128xbf16>
    %c15_i32 = arith.constant 15 : i32
    %59 = vector.broadcast %c15_i32 : i32 to vector<64x1xi32>
    %60 = arith.cmpi slt, %18, %59 : vector<64x1xi32>
    %cst_27 = arith.constant 0.000000e+00 : bf16
    %61 = vector.broadcast %cst_27 : bf16 to vector<64x128xbf16>
    %62 = vector.shape_cast %60 : vector<64x1xi1> to vector<64x1xi1>
    %63 = vector.broadcast %62 : vector<64x1xi1> to vector<64x128xi1>
    %64 = arith.select %63, %58, %61 : vector<64x128xi1>, vector<64x128xbf16>
    %65 = tpu.concatenate %56, %57, %64 in 1 : vector<64x128xbf16>, vector<64x128xbf16>, vector<64x128xbf16> -> vector<64x384xbf16>
    %cst_28 = arith.constant dense<0.000000e+00> : vector<64x8xf32>
    %66 = tpu.matmul %65, %47, %cst_28 {dimension_numbers = #tpu.dot_dimension_numbers<[1], [0], [0], [1], [0, 0, 1, 1], [], []>} : vector<64x384xbf16>, vector<384x8xbf16>, vector<64x8xf32> -> vector<64x8xf32>
    %67 = vector.broadcast %48 : vector<1x8xf32> to vector<64x8xf32>
    %68 = arith.addf %66, %67 : vector<64x8xf32>
    %c0_29 = arith.constant 0 : index
    %c0_30 = arith.constant 0 : index
    %69 = vector.load %arg6[%c0_29, %c0_30] : memref<1x8xf32, #tpu.memory_space<vmem>>, vector<1x8xf32>
    %c0_31 = arith.constant 0 : index
    %c0_32 = arith.constant 0 : index
    %70 = vector.load %arg7[%c0_31, %c0_32] : memref<1x8xf32, #tpu.memory_space<vmem>>, vector<1x8xf32>
    %cst_33 = arith.constant dense<0.000000e+00> : vector<64xf32>
    %71 = vector.multi_reduction <add>, %68, %cst_33 [1] : vector<64x8xf32> to vector<64xf32>
    %72 = vector.shape_cast %71 : vector<64xf32> to vector<64x1xf32>
    %cst_34 = arith.constant 8.000000e+00 : f32
    %73 = vector.broadcast %cst_34 : f32 to vector<64x1xf32>
    %74 = arith.divf %72, %73 : vector<64x1xf32>
    %75 = vector.broadcast %74 : vector<64x1xf32> to vector<64x8xf32>
    %76 = arith.subf %68, %75 : vector<64x8xf32>
    %77 = arith.mulf %76, %76 : vector<64x8xf32>
    %cst_35 = arith.constant dense<0.000000e+00> : vector<64xf32>
    %78 = vector.multi_reduction <add>, %77, %cst_35 [1] : vector<64x8xf32> to vector<64xf32>
    %79 = vector.shape_cast %78 : vector<64xf32> to vector<64x1xf32>
    %cst_36 = arith.constant 8.000000e+00 : f32
    %80 = vector.broadcast %cst_36 : f32 to vector<64x1xf32>
    %81 = arith.divf %79, %80 : vector<64x1xf32>
    %82 = vector.broadcast %74 : vector<64x1xf32> to vector<64x8xf32>
    %83 = arith.subf %68, %82 : vector<64x8xf32>
    %cst_37 = arith.constant 9.99999974E-6 : f32
    %84 = vector.broadcast %cst_37 : f32 to vector<64x1xf32>
    %85 = arith.addf %81, %84 : vector<64x1xf32>
    %86 = math.rsqrt %85 : vector<64x1xf32>
    %87 = vector.broadcast %86 : vector<64x1xf32> to vector<64x8xf32>
    %88 = arith.mulf %83, %87 : vector<64x8xf32>
    %89 = vector.broadcast %69 : vector<1x8xf32> to vector<64x8xf32>
    %90 = arith.mulf %88, %89 : vector<64x8xf32>
    %91 = vector.broadcast %70 : vector<1x8xf32> to vector<64x8xf32>
    %92 = arith.addf %90, %91 : vector<64x8xf32>
    %cst_38 = arith.constant 0.000000e+00 : f32
    %93 = vector.broadcast %cst_38 : f32 to vector<64x8xf32>
    %94 = arith.maximumf %92, %93 : vector<64x8xf32>
    %95 = arith.truncf %94 : vector<64x8xf32> to vector<64x8xbf16>
    %c0_39 = arith.constant 0 : index
    %c0_40 = arith.constant 0 : index
    %96 = vector.load %arg8[%c0_39, %c0_40] : memref<384x8xbf16, #tpu.memory_space<vmem>>, vector<384x8xbf16>
    %c0_41 = arith.constant 0 : index
    %c0_42 = arith.constant 0 : index
    %97 = vector.load %arg9[%c0_41, %c0_42] : memref<1x8xf32, #tpu.memory_space<vmem>>, vector<1x8xf32>
    %c16_43 = arith.constant 16 : index
    %c0_44 = arith.constant 0 : index
    %98 = vector.load %arg12[%c16_43, %c0_44] : memref<96x128xbf16, #tpu.memory_space<vmem>>, vector<64x8xbf16>
    tpu.vector_store %arg12[%c16_43, %c0_44], %95 {strides = array<i32>} : memref<96x128xbf16, #tpu.memory_space<vmem>>, vector<64x8xbf16>,
    %c15_45 = arith.constant 15 : index
    %c0_46 = arith.constant 0 : index
    %99 = vector.load %arg12[%c15_45, %c0_46] : memref<96x128xbf16, #tpu.memory_space<vmem>>, vector<64x128xbf16>
    %c1_i32_47 = arith.constant 1 : i32
    %100 = vector.broadcast %c1_i32_47 : i32 to vector<64x1xi32>
    %101 = arith.cmpi sge, %18, %100 : vector<64x1xi32>
    %cst_48 = arith.constant 0.000000e+00 : bf16
    %102 = vector.broadcast %cst_48 : bf16 to vector<64x128xbf16>
    %103 = vector.shape_cast %101 : vector<64x1xi1> to vector<64x1xi1>
    %104 = vector.broadcast %103 : vector<64x1xi1> to vector<64x128xi1>
    %105 = arith.select %104, %99, %102 : vector<64x128xi1>, vector<64x128xbf16>
    %c16_49 = arith.constant 16 : index
    %c0_50 = arith.constant 0 : index
    %106 = vector.load %arg12[%c16_49, %c0_50] : memref<96x128xbf16, #tpu.memory_space<vmem>>, vector<64x128xbf16>
    %c17_51 = arith.constant 17 : index
    %c0_52 = arith.constant 0 : index
    %107 = vector.load %arg12[%c17_51, %c0_52] : memref<96x128xbf16, #tpu.memory_space<vmem>>, vector<64x128xbf16>
    %c15_i32_53 = arith.constant 15 : i32
    %108 = vector.broadcast %c15_i32_53 : i32 to vector<64x1xi32>
    %109 = arith.cmpi slt, %18, %108 : vector<64x1xi32>
    %cst_54 = arith.constant 0.000000e+00 : bf16
    %110 = vector.broadcast %cst_54 : bf16 to vector<64x128xbf16>
    %111 = vector.shape_cast %109 : vector<64x1xi1> to vector<64x1xi1>
    %112 = vector.broadcast %111 : vector<64x1xi1> to vector<64x128xi1>
    %113 = arith.select %112, %107, %110 : vector<64x128xi1>, vector<64x128xbf16>
    %114 = tpu.concatenate %105, %106, %113 in 1 : vector<64x128xbf16>, vector<64x128xbf16>, vector<64x128xbf16> -> vector<64x384xbf16>
    %cst_55 = arith.constant dense<0.000000e+00> : vector<64x8xf32>
    %115 = tpu.matmul %114, %96, %cst_55 {dimension_numbers = #tpu.dot_dimension_numbers<[1], [0], [0], [1], [0, 0, 1, 1], [], []>} : vector<64x384xbf16>, vector<384x8xbf16>, vector<64x8xf32> -> vector<64x8xf32>
    %116 = vector.broadcast %97 : vector<1x8xf32> to vector<64x8xf32>
    %117 = arith.addf %115, %116 : vector<64x8xf32>
    %c0_56 = arith.constant 0 : index
    %c0_57 = arith.constant 0 : index
    %118 = vector.load %arg10[%c0_56, %c0_57] : memref<1x8xf32, #tpu.memory_space<vmem>>, vector<1x8xf32>
    %119 = vector.broadcast %118 : vector<1x8xf32> to vector<64x8xf32>
    %120 = arith.mulf %117, %119 : vector<64x8xf32>
    %121 = arith.addf %68, %120 : vector<64x8xf32>
    %c0_58 = arith.constant 0 : index
    %c0_59 = arith.constant 0 : index
    %122 = vector.load %arg13[%c0_58, %c0_59] : memref<64x8xf32, #tpu.memory_space<vmem>>, vector<64x8xf32>
    tpu.vector_store %arg13[%c0_58, %c0_59], %121 {strides = array<i32>} : memref<64x8xf32, #tpu.memory_space<vmem>>, vector<64x8xf32>,
    %c0_60 = arith.constant 0 : index
    %c0_61 = arith.constant 0 : index
    %123 = tpu.strided_load %arg13[%c0_60, %c0_61] {strides = array<i32: 2, 1>} : memref<64x8xf32, #tpu.memory_space<vmem>>, vector<32x8xf32>
    %c1 = arith.constant 1 : index
    %c0_62 = arith.constant 0 : index
    %124 = tpu.strided_load %arg13[%c1, %c0_62] {strides = array<i32: 2, 1>} : memref<64x8xf32, #tpu.memory_space<vmem>>, vector<32x8xf32>
    %125 = arith.maximumf %123, %124 : vector<32x8xf32>
    %c0_63 = arith.constant 0 : index
    %c0_64 = arith.constant 0 : index
    %126 = vector.load %arg11[%c0_63, %c0_64] : memref<32x8xf32, #tpu.memory_space<vmem>>, vector<32x8xf32>
    tpu.vector_store %arg11[%c0_63, %c0_64], %125 {strides = array<i32>} : memref<32x8xf32, #tpu.memory_space<vmem>>, vector<32x8xf32>,
    return
  }
  func.func @transform_0(%arg0: i32) -> (i32, i32) {
    %c0_i32 = arith.constant 0 : i32
    %c0_i32_0 = arith.constant 0 : i32
    return %arg0, %c0_i32 : i32, i32
  }
  func.func @transform_1(%arg0: i32) -> (i32, i32) {
    %c0_i32 = arith.constant 0 : i32
    %c0_i32_0 = arith.constant 0 : i32
    %c0_i32_1 = arith.constant 0 : i32
    return %c0_i32, %c0_i32_0 : i32, i32
  }
  func.func @transform_2(%arg0: i32) -> (i32, i32) {
    %c0_i32 = arith.constant 0 : i32
    %c0_i32_0 = arith.constant 0 : i32
    %c0_i32_1 = arith.constant 0 : i32
    return %c0_i32, %c0_i32_0 : i32, i32
  }
  func.func @transform_3(%arg0: i32) -> (i32, i32) {
    %c0_i32 = arith.constant 0 : i32
    %c0_i32_0 = arith.constant 0 : i32
    %c0_i32_1 = arith.constant 0 : i32
    return %c0_i32, %c0_i32_0 : i32, i32
  }
  func.func @transform_4(%arg0: i32) -> (i32, i32) {
    %c0_i32 = arith.constant 0 : i32
    %c0_i32_0 = arith.constant 0 : i32
    %c0_i32_1 = arith.constant 0 : i32
    return %c0_i32, %c0_i32_0 : i32, i32
  }
  func.func @transform_5(%arg0: i32) -> (i32, i32) {
    %c0_i32 = arith.constant 0 : i32
    %c0_i32_0 = arith.constant 0 : i32
    %c0_i32_1 = arith.constant 0 : i32
    return %c0_i32, %c0_i32_0 : i32, i32
  }
  func.func @transform_6(%arg0: i32) -> (i32, i32) {
    %c0_i32 = arith.constant 0 : i32
    %c0_i32_0 = arith.constant 0 : i32
    %c0_i32_1 = arith.constant 0 : i32
    return %c0_i32, %c0_i32_0 : i32, i32
  }
  func.func @transform_7(%arg0: i32) -> (i32, i32) {
    %c0_i32 = arith.constant 0 : i32
    %c0_i32_0 = arith.constant 0 : i32
    %c0_i32_1 = arith.constant 0 : i32
    return %c0_i32, %c0_i32_0 : i32, i32
  }
  func.func @transform_8(%arg0: i32) -> (i32, i32) {
    %c0_i32 = arith.constant 0 : i32
    %c0_i32_0 = arith.constant 0 : i32
    %c0_i32_1 = arith.constant 0 : i32
    return %c0_i32, %c0_i32_0 : i32, i32
  }
  func.func @transform_9(%arg0: i32) -> (i32, i32) {
    %c0_i32 = arith.constant 0 : i32
    %c0_i32_0 = arith.constant 0 : i32
    %c0_i32_1 = arith.constant 0 : i32
    return %c0_i32, %c0_i32_0 : i32, i32
  }
  func.func @transform_10(%arg0: i32) -> (i32, i32) {
    %c0_i32 = arith.constant 0 : i32
    %c0_i32_0 = arith.constant 0 : i32
    return %arg0, %c0_i32 : i32, i32
  }
}

</mosaic_0001>

<llo_original>
// kernel: tpu_custom_call.1
$region0: #{tpu_custom_call.1}
  #allocation0 [shape = 'u32[]', space=smem, size = 0x4, offset = 0x4, fixed_abs, tag = 'smem constant byte address 0x4 - core index']
  #allocation1 [shape = 'u32[144,128]{1,0:T(1,128)}', space=vmem, size = 0x12000, scoped, tag = 'internal scratch']
  #allocation2 [shape = 'bf16[96,128]{1,0:T(16,128)(2,1)}', space=vmem, size = 0x6000, scoped, tag = 'scratch operand']
  #allocation3 [shape = 'f32[64,8]{1,0:T(8,128)}', space=vmem, size = 0x8000, scoped, tag = 'scratch operand']
  %s0 = inlined_call_operand.vmem [shape: f32[64,4], index: 0, kind: input, shape index: {}]
  %s1 = inlined_call_operand.vmem [shape: f32[1,4], index: 1, kind: input, shape index: {}]
  %s2 = inlined_call_operand.vmem [shape: f32[1,4], index: 2, kind: input, shape index: {}]
  %s3 = inlined_call_operand.vmem [shape: bf16[384,8], index: 3, kind: input, shape index: {}]
  %s4 = inlined_call_operand.vmem [shape: f32[1,8], index: 4, kind: input, shape index: {}]
  %s5 = inlined_call_operand.vmem [shape: f32[1,8], index: 5, kind: input, shape index: {}]
  %s6 = inlined_call_operand.vmem [shape: f32[1,8], index: 6, kind: input, shape index: {}]
  %s7 = inlined_call_operand.vmem [shape: bf16[384,8], index: 7, kind: input, shape index: {}]
  %s8 = inlined_call_operand.vmem [shape: f32[1,8], index: 8, kind: input, shape index: {}]
  %s9 = inlined_call_operand.vmem [shape: f32[1,8], index: 9, kind: input, shape index: {}]
  %s10 = inlined_call_operand.vmem [shape: f32[32,8], index: 10, kind: output, shape index: {}]
  %s11 = sld [smem:[#allocation0]]
  $region50: #{tpu_custom_call.1} parent=0
    _
  %s13 = ssub.s32 1, %s11
  %s14 = scalar_select 0, %s13, %s11
  // Predicated region
  $region2: #{tpu_custom_call.1} parent=0 // pred_check
    _
  $region3: #{tpu_custom_call.1} parent=0 // pred_check_branch
    %16 = sbr.rel (0) target = $region5
  $region4: #{tpu_custom_call.1} parent=0 // pred_region
    _
  $region5: #{tpu_custom_call.1} parent=0 // pred_fallthru
    _
  // Predicated region
  $region6: #{tpu_custom_call.1} parent=0 // pred_check
    _
  $region7: #{tpu_custom_call.1} parent=0 // pred_check_branch
    %18 = sbr.rel (0) target = $region9
  $region8: #{tpu_custom_call.1} parent=0 // pred_region
    _
  $region9: #{tpu_custom_call.1} parent=0 // pred_fallthru
    _
  // Predicated region
  $region10: #{tpu_custom_call.1} parent=0 // pred_check
    _
  $region11: #{tpu_custom_call.1} parent=0 // pred_check_branch
    %20 = sbr.rel (0) target = $region13
  $region12: #{tpu_custom_call.1} parent=0 // pred_region
    _
  $region13: #{tpu_custom_call.1} parent=0 // pred_fallthru
    _
  // Predicated region
  $region14: #{tpu_custom_call.1} parent=0 // pred_check
    _
  $region15: #{tpu_custom_call.1} parent=0 // pred_check_branch
    %22 = sbr.rel (0) target = $region17
  $region16: #{tpu_custom_call.1} parent=0 // pred_region
    _
  $region17: #{tpu_custom_call.1} parent=0 // pred_fallthru
    _
  // Predicated region
  $region18: #{tpu_custom_call.1} parent=0 // pred_check
    _
  $region19: #{tpu_custom_call.1} parent=0 // pred_check_branch
    %24 = sbr.rel (0) target = $region21
  $region20: #{tpu_custom_call.1} parent=0 // pred_region
    _
  $region21: #{tpu_custom_call.1} parent=0 // pred_fallthru
    _
  // Predicated region
  $region22: #{tpu_custom_call.1} parent=0 // pred_check
    _
  $region23: #{tpu_custom_call.1} parent=0 // pred_check_branch
    %26 = sbr.rel (0) target = $region25
  $region24: #{tpu_custom_call.1} parent=0 // pred_region
    _
  $region25: #{tpu_custom_call.1} parent=0 // pred_fallthru
    _
  // Predicated region
  $region26: #{tpu_custom_call.1} parent=0 // pred_check
    _
  $region27: #{tpu_custom_call.1} parent=0 // pred_check_branch
    %28 = sbr.rel (0) target = $region29
  $region28: #{tpu_custom_call.1} parent=0 // pred_region
    _
  $region29: #{tpu_custom_call.1} parent=0 // pred_fallthru
    _
  // Predicated region
  $region30: #{tpu_custom_call.1} parent=0 // pred_check
    _
  $region31: #{tpu_custom_call.1} parent=0 // pred_check_branch
    %30 = sbr.rel (0) target = $region33
  $region32: #{tpu_custom_call.1} parent=0 // pred_region
    _
  $region33: #{tpu_custom_call.1} parent=0 // pred_fallthru
    _
  // Predicated region
  $region34: #{tpu_custom_call.1} parent=0 // pred_check
    _
  $region35: #{tpu_custom_call.1} parent=0 // pred_check_branch
    %32 = sbr.rel (0) target = $region37
  $region36: #{tpu_custom_call.1} parent=0 // pred_region
    _
  $region37: #{tpu_custom_call.1} parent=0 // pred_fallthru
    _
  // Predicated region
  $region38: #{tpu_custom_call.1} parent=0 // pred_check
    _
  $region39: #{tpu_custom_call.1} parent=0 // pred_check_branch
    %34 = sbr.rel (0) target = $region41
  $region40: #{tpu_custom_call.1} parent=0 // pred_region
    _
  $region41: #{tpu_custom_call.1} parent=0 // pred_fallthru
    _
  %38 = vst [vmem:[#allocation2] sm:$0xff] 0
  %39 = vst [vmem:[#allocation2 + $0x8] sm:$0xff] 0
  %40 = vst [vmem:[#allocation2 + $0x10] sm:$0xff] 0
  %41 = vst [vmem:[#allocation2 + $0x18] sm:$0xff] 0
  %42 = vst [vmem:[#allocation2 + $0x20] sm:$0xff] 0
  %43 = vst [vmem:[#allocation2 + $0x28] sm:$0xff] 0
  %v44 = vlaneseq
  %v45 = vshrl.u32 %v44, 7
  %v46 = vadd.s32 %v45, 8
  %v47 = vadd.s32 %v45, 16
  %v48 = vadd.s32 %v45, 24
  %v49 = vadd.s32 %v45, 32
  %v50 = vadd.s32 %v45, 40
  %v51 = vadd.s32 %v45, 48
  %v52 = vadd.s32 %v45, 56
  %vm53 = vcmp.lt.s32.totalorder %v45, 0
  %v54 = vsub.s32 0, %v45
  %v55 = vsel %vm53, %v54, %v45
  %v56 = vshrl.u32 %v55, 4
  %v57 = vand.u32 %v55, 15
  %v58 = vsub.s32 0, %v57
  %v59 = vsel %vm53, %v58, %v57
  %vm60 = vcmp.lt.s32.totalorder %v46, 0
  %v61 = vsub.s32 0, %v46
  %v62 = vsel %vm60, %v61, %v46
  %v63 = vshrl.u32 %v62, 4
  %v64 = vand.u32 %v62, 15
  %v65 = vsub.s32 0, %v64
  %v66 = vsel %vm60, %v65, %v64
  %vm67 = vcmp.lt.s32.totalorder %v47, 0
  %v68 = vsub.s32 0, %v47
  %v69 = vsel %vm67, %v68, %v47
  %v70 = vshrl.u32 %v69, 4
  %v71 = vand.u32 %v69, 15
  %v72 = vsub.s32 0, %v71
  %v73 = vsel %vm67, %v72, %v71
  %vm74 = vcmp.lt.s32.totalorder %v48, 0
  %v75 = vsub.s32 0, %v48
  %v76 = vsel %vm74, %v75, %v48
  %v77 = vshrl.u32 %v76, 4
  %v78 = vand.u32 %v76, 15
  %v79 = vsub.s32 0, %v78
  %v80 = vsel %vm74, %v79, %v78
  %vm81 = vcmp.lt.s32.totalorder %v49, 0
  %v82 = vsub.s32 0, %v49
  %v83 = vsel %vm81, %v82, %v49
  %v84 = vshrl.u32 %v83, 4
  %v85 = vand.u32 %v83, 15
  %v86 = vsub.s32 0, %v85
  %v87 = vsel %vm81, %v86, %v85
  %vm88 = vcmp.lt.s32.totalorder %v50, 0
  %v89 = vsub.s32 0, %v50
  %v90 = vsel %vm88, %v89, %v50
  %v91 = vshrl.u32 %v90, 4
  %v92 = vand.u32 %v90, 15
  %v93 = vsub.s32 0, %v92
  %v94 = vsel %vm88, %v93, %v92
  %vm95 = vcmp.lt.s32.totalorder %v51, 0
  %v96 = vsub.s32 0, %v51
  %v97 = vsel %vm95, %v96, %v51
  %v98 = vshrl.u32 %v97, 4
  %v99 = vand.u32 %v97, 15
  %v100 = vsub.s32 0, %v99
  %v101 = vsel %vm95, %v100, %v99
  %vm102 = vcmp.lt.s32.totalorder %v52, 0
  %v103 = vsub.s32 0, %v52
  %v104 = vsel %vm102, %v103, %v52
  %v105 = vshrl.u32 %v104, 4
  %v106 = vand.u32 %v104, 15
  %v107 = vsub.s32 0, %v106
  %v108 = vsel %vm102, %v107, %v106
  %vm109 = vcmp.ne.s32.totalorder %v59, 0
  %vm110 = vcmp.ne.s32.totalorder %v66, 0
  %vm111 = vcmp.ne.s32.totalorder %v73, 0
  %vm112 = vcmp.ne.s32.totalorder %v80, 0
  %vm113 = vcmp.ne.s32.totalorder %v87, 0
  %vm114 = vcmp.ne.s32.totalorder %v94, 0
  %vm115 = vcmp.ne.s32.totalorder %v101, 0
  %vm116 = vcmp.ne.s32.totalorder %v108, 0
  %vm117 = vcmp.lt.s32.totalorder %v59, 0
  %vm118 = vcmp.lt.s32.totalorder %v66, 0
  %vm119 = vcmp.lt.s32.totalorder %v73, 0
  %vm120 = vcmp.lt.s32.totalorder %v80, 0
  %vm121 = vcmp.lt.s32.totalorder %v87, 0
  %vm122 = vcmp.lt.s32.totalorder %v94, 0
  %vm123 = vcmp.lt.s32.totalorder %v101, 0
  %vm124 = vcmp.lt.s32.totalorder %v108, 0
  %vm125 = vmand %vm117, %vm109
  %vm126 = vmand %vm118, %vm110
  %vm127 = vmand %vm119, %vm111
  %vm128 = vmand %vm120, %vm112
  %vm129 = vmand %vm121, %vm113
  %vm130 = vmand %vm122, %vm114
  %vm131 = vmand %vm123, %vm115
  %vm132 = vmand %vm124, %vm116
  %v133 = vadd.s32 %v59, 16
  %v134 = vadd.s32 %v66, 16
  %v135 = vadd.s32 %v73, 16
  %v136 = vadd.s32 %v80, 16
  %v137 = vadd.s32 %v87, 16
  %v138 = vadd.s32 %v94, 16
  %v139 = vadd.s32 %v101, 16
  %v140 = vadd.s32 %v108, 16
  %v141 = vsel %vm125, %v133, %v59
  %v142 = vsel %vm126, %v134, %v66
  %v143 = vsel %vm127, %v135, %v73
  %v144 = vsel %vm128, %v136, %v80
  %v145 = vsel %vm129, %v137, %v87
  %v146 = vsel %vm130, %v138, %v94
  %v147 = vsel %vm131, %v139, %v101
  %v148 = vsel %vm132, %v140, %v108
  %v149 = vld [vmem:[%s0] sm:$0xff]
  %v150 = vld [vmem:[%s0 + $0x8] sm:$0xff]
  %v151 = vld [vmem:[%s0 + $0x10] sm:$0xff]
  %v152 = vld [vmem:[%s0 + $0x18] sm:$0xff]
  %v153 = vld [vmem:[%s0 + $0x20] sm:$0xff]
  %v154 = vld [vmem:[%s0 + $0x28] sm:$0xff]
  %v155 = vld [vmem:[%s0 + $0x30] sm:$0xff]
  %v156 = vld [vmem:[%s0 + $0x38] sm:$0xff]
  %v157 = vld [vmem:[%s1] sm:$0x1]
  %v158 = vld [vmem:[%s2] sm:$0x1]
  %vm159 = vcmask 31744
  %v160 = vsel %vm159, %v149, 0.0
  %161 = vadd.xlane.f32.xlu0 %v160
  %v162 = vpop.xlane.xlu0 %161
  %v163 = vsel %vm159, %v150, 0.0
  %164 = vadd.xlane.f32.xlu0 %v163
  %v165 = vpop.xlane.xlu0 %164
  %v166 = vsel %vm159, %v151, 0.0
  %167 = vadd.xlane.f32.xlu0 %v166
  %v168 = vpop.xlane.xlu0 %167
  %v169 = vsel %vm159, %v152, 0.0
  %170 = vadd.xlane.f32.xlu0 %v169
  %v171 = vpop.xlane.xlu0 %170
  %v172 = vsel %vm159, %v153, 0.0
  %173 = vadd.xlane.f32.xlu0 %v172
  %v174 = vpop.xlane.xlu0 %173
  %v175 = vsel %vm159, %v154, 0.0
  %176 = vadd.xlane.f32.xlu0 %v175
  %v177 = vpop.xlane.xlu0 %176
  %v178 = vsel %vm159, %v155, 0.0
  %179 = vadd.xlane.f32.xlu0 %v178
  %v180 = vpop.xlane.xlu0 %179
  %v181 = vsel %vm159, %v156, 0.0
  %182 = vadd.xlane.f32.xlu0 %v181
  %v183 = vpop.xlane.xlu0 %182
  %v184 = vrcp.pop 4.0
  %v185 = vmul.f32 %v162, %v184
  %v186 = vmul.f32 %v165, %v184
  %v187 = vmul.f32 %v168, %v184
  %v188 = vmul.f32 %v171, %v184
  %v189 = vmul.f32 %v174, %v184
  %v190 = vmul.f32 %v177, %v184
  %v191 = vmul.f32 %v180, %v184
  %v192 = vmul.f32 %v183, %v184
  %v193 = vsub.f32 %v149, %v185
  %v194 = vsub.f32 %v150, %v186
  %v195 = vsub.f32 %v151, %v187
  %v196 = vsub.f32 %v152, %v188
  %v197 = vsub.f32 %v153, %v189
  %v198 = vsub.f32 %v154, %v190
  %v199 = vsub.f32 %v155, %v191
  %v200 = vsub.f32 %v156, %v192
  %v201 = vmul.f32 %v193, %v193
  %v202 = vmul.f32 %v194, %v194
  %v203 = vmul.f32 %v195, %v195
  %v204 = vmul.f32 %v196, %v196
  %v205 = vmul.f32 %v197, %v197
  %v206 = vmul.f32 %v198, %v198
  %v207 = vmul.f32 %v199, %v199
  %v208 = vmul.f32 %v200, %v200
  %v209 = vsel %vm159, %v201, 0.0
  %210 = vadd.xlane.f32.xlu0 %v209
  %v211 = vpop.xlane.xlu0 %210
  %v212 = vsel %vm159, %v202, 0.0
  %213 = vadd.xlane.f32.xlu0 %v212
  %v214 = vpop.xlane.xlu0 %213
  %v215 = vsel %vm159, %v203, 0.0
  %216 = vadd.xlane.f32.xlu0 %v215
  %v217 = vpop.xlane.xlu0 %216
  %v218 = vsel %vm159, %v204, 0.0
  %219 = vadd.xlane.f32.xlu0 %v218
  %v220 = vpop.xlane.xlu0 %219
  %v221 = vsel %vm159, %v205, 0.0
  %222 = vadd.xlane.f32.xlu0 %v221
  %v223 = vpop.xlane.xlu0 %222
  %v224 = vsel %vm159, %v206, 0.0
  %225 = vadd.xlane.f32.xlu0 %v224
  %v226 = vpop.xlane.xlu0 %225
  %v227 = vsel %vm159, %v207, 0.0
  %228 = vadd.xlane.f32.xlu0 %v227
  %v229 = vpop.xlane.xlu0 %228
  %v230 = vsel %vm159, %v208, 0.0
  %231 = vadd.xlane.f32.xlu0 %v230
  %v232 = vpop.xlane.xlu0 %231
  %v233 = vmul.f32 %v211, %v184
  %v234 = vmul.f32 %v214, %v184
  %v235 = vmul.f32 %v217, %v184
  %v236 = vmul.f32 %v220, %v184
  %v237 = vmul.f32 %v223, %v184
  %v238 = vmul.f32 %v226, %v184
  %v239 = vmul.f32 %v229, %v184
  %v240 = vmul.f32 %v232, %v184
  %v241 = vadd.f32 %v233, 1e-05
  %v242 = vadd.f32 %v234, 1e-05
  %v243 = vadd.f32 %v235, 1e-05
  %v244 = vadd.f32 %v236, 1e-05
  %v245 = vadd.f32 %v237, 1e-05
  %v246 = vadd.f32 %v238, 1e-05
  %v247 = vadd.f32 %v239, 1e-05
  %v248 = vadd.f32 %v240, 1e-05
  %v249 = vrsqrt.pop %v241
  %v250 = vrsqrt.pop %v242
  %v251 = vrsqrt.pop %v243
  %v252 = vrsqrt.pop %v244
  %v253 = vrsqrt.pop %v245
  %v254 = vrsqrt.pop %v246
  %v255 = vrsqrt.pop %v247
  %v256 = vrsqrt.pop %v248
  %v257 = vmul.f32 %v193, %v249
  %v258 = vmul.f32 %v194, %v250
  %v259 = vmul.f32 %v195, %v251
  %v260 = vmul.f32 %v196, %v252
  %v261 = vmul.f32 %v197, %v253
  %v262 = vmul.f32 %v198, %v254
  %v263 = vmul.f32 %v199, %v255
  %v264 = vmul.f32 %v200, %v256
  %v266 = vlaneseq
  %v267 = vshrl.u32 %v266, 7
  %v268 = vsub.s32 0, %v267
  %v269 = vrot.slane %v157, %v268
  %v271 = vmul.f32 %v257, %v269
  %v272 = vmul.f32 %v258, %v269
  %v273 = vmul.f32 %v259, %v269
  %v274 = vmul.f32 %v260, %v269
  %v275 = vmul.f32 %v261, %v269
  %v276 = vmul.f32 %v262, %v269
  %v277 = vmul.f32 %v263, %v269
  %v278 = vmul.f32 %v264, %v269
  %v280 = vlaneseq
  %v281 = vshrl.u32 %v280, 7
  %v282 = vsub.s32 0, %v281
  %v283 = vrot.slane %v158, %v282
  %v285 = vadd.f32 %v271, %v283
  %v286 = vadd.f32 %v272, %v283
  %v287 = vadd.f32 %v273, %v283
  %v288 = vadd.f32 %v274, %v283
  %v289 = vadd.f32 %v275, %v283
  %v290 = vadd.f32 %v276, %v283
  %v291 = vadd.f32 %v277, %v283
  %v292 = vadd.f32 %v278, %v283
  %v293 = vmax.f32 %v285, 0.0
  %v294 = vmax.f32 %v286, 0.0
  %v295 = vmax.f32 %v287, 0.0
  %v296 = vmax.f32 %v288, 0.0
  %v297 = vmax.f32 %v289, 0.0
  %v298 = vmax.f32 %v290, 0.0
  %v299 = vmax.f32 %v291, 0.0
  %v300 = vmax.f32 %v292, 0.0
  %v301 = vpack.c.bf16 %v294, %v293
  %v302 = vpack.c.bf16 %v296, %v295
  %v303 = vpack.c.bf16 %v298, %v297
  %v304 = vpack.c.bf16 %v300, %v299
  %v305 = vld [vmem:[%s3] sm:$0xf]
  %v306 = vld [vmem:[%s3 + $0x4] sm:$0xf]
  %v307 = vld [vmem:[%s3 + $0x8] sm:$0xf]
  %v308 = vld [vmem:[%s3 + $0xc] sm:$0xf]
  %v309 = vld [vmem:[%s3 + $0x10] sm:$0xf]
  %v310 = vld [vmem:[%s3 + $0x14] sm:$0xf]
  %v311 = vld [vmem:[%s3 + $0x18] sm:$0xf]
  %v312 = vld [vmem:[%s3 + $0x1c] sm:$0xf]
  %v313 = vld [vmem:[%s3 + $0x20] sm:$0xf]
  %v314 = vld [vmem:[%s3 + $0x24] sm:$0xf]
  %v315 = vld [vmem:[%s3 + $0x28] sm:$0xf]
  %v316 = vld [vmem:[%s3 + $0x2c] sm:$0xf]
  %v317 = vld [vmem:[%s3 + $0x30] sm:$0xf]
  %v318 = vld [vmem:[%s3 + $0x34] sm:$0xf]
  %v319 = vld [vmem:[%s3 + $0x38] sm:$0xf]
  %v320 = vld [vmem:[%s3 + $0x3c] sm:$0xf]
  %v321 = vld [vmem:[%s3 + $0x40] sm:$0xf]
  %v322 = vld [vmem:[%s3 + $0x44] sm:$0xf]
  %v323 = vld [vmem:[%s3 + $0x48] sm:$0xf]
  %v324 = vld [vmem:[%s3 + $0x4c] sm:$0xf]
  %v325 = vld [vmem:[%s3 + $0x50] sm:$0xf]
  %v326 = vld [vmem:[%s3 + $0x54] sm:$0xf]
  %v327 = vld [vmem:[%s3 + $0x58] sm:$0xf]
  %v328 = vld [vmem:[%s3 + $0x5c] sm:$0xf]
  %v329 = vld [vmem:[%s3 + $0x60] sm:$0xf]
  %v330 = vld [vmem:[%s3 + $0x64] sm:$0xf]
  %v331 = vld [vmem:[%s3 + $0x68] sm:$0xf]
  %v332 = vld [vmem:[%s3 + $0x6c] sm:$0xf]
  %v333 = vld [vmem:[%s3 + $0x70] sm:$0xf]
  %v334 = vld [vmem:[%s3 + $0x74] sm:$0xf]
  %v335 = vld [vmem:[%s3 + $0x78] sm:$0xf]
  %v336 = vld [vmem:[%s3 + $0x7c] sm:$0xf]
  %v337 = vld [vmem:[%s3 + $0x80] sm:$0xf]
  %v338 = vld [vmem:[%s3 + $0x84] sm:$0xf]
  %v339 = vld [vmem:[%s3 + $0x88] sm:$0xf]
  %v340 = vld [vmem:[%s3 + $0x8c] sm:$0xf]
  %v341 = vld [vmem:[%s3 + $0x90] sm:$0xf]
  %v342 = vld [vmem:[%s3 + $0x94] sm:$0xf]
  %v343 = vld [vmem:[%s3 + $0x98] sm:$0xf]
  %v344 = vld [vmem:[%s3 + $0x9c] sm:$0xf]
  %v345 = vld [vmem:[%s3 + $0xa0] sm:$0xf]
  %v346 = vld [vmem:[%s3 + $0xa4] sm:$0xf]
  %v347 = vld [vmem:[%s3 + $0xa8] sm:$0xf]
  %v348 = vld [vmem:[%s3 + $0xac] sm:$0xf]
  %v349 = vld [vmem:[%s3 + $0xb0] sm:$0xf]
  %v350 = vld [vmem:[%s3 + $0xb4] sm:$0xf]
  %v351 = vld [vmem:[%s3 + $0xb8] sm:$0xf]
  %v352 = vld [vmem:[%s3 + $0xbc] sm:$0xf]
  %v353 = vld [vmem:[%s4] sm:$0x1]
  %354 = vst.msk [vmem:[#allocation2 + $0x8] sm:$0xff] %vm159, %v301
  %355 = vst.msk [vmem:[#allocation2 + $0x10] sm:$0xff] %vm159, %v302
  %356 = vst.msk [vmem:[#allocation2 + $0x18] sm:$0xff] %vm159, %v303
  %357 = vst.msk [vmem:[#allocation2 + $0x20] sm:$0xff] %vm159, %v304
  %v358 = vld [vmem:[#allocation2] sm:$0x80]
  %v359 = vld [vmem:[#allocation2 + $0x8] sm:$0xff]
  %v360 = vld [vmem:[#allocation2 + $0x10] sm:$0xff]
  %v361 = vld [vmem:[#allocation2 + $0x18] sm:$0xff]
  %v362 = vld [vmem:[#allocation2 + $0x20] sm:$0xff]
  %vm363 = vcmp.ge.s32.totalorder %v141, 1
  %vm364 = vcmp.ge.s32.totalorder %v142, 1
  %vm365 = vcmp.ge.s32.totalorder %v143, 1
  %vm366 = vcmp.ge.s32.totalorder %v144, 1
  %vm367 = vcmp.ge.s32.totalorder %v145, 1
  %vm368 = vcmp.ge.s32.totalorder %v146, 1
  %vm369 = vcmp.ge.s32.totalorder %v147, 1
  %vm370 = vcmp.ge.s32.totalorder %v148, 1
  %v371 = vsel %vm363, 1, 0
  %v372 = vsel %vm364, 1, 0
  %v373 = vsel %vm365, 1, 0
  %v374 = vsel %vm366, 1, 0
  %v375 = vsel %vm367, 1, 0
  %v376 = vsel %vm368, 1, 0
  %v377 = vsel %vm369, 1, 0
  %v378 = vsel %vm370, 1, 0
  %vm379 = vcmp.eq.s32.totalorder %v371, 1
  %vm380 = vcmp.eq.s32.totalorder %v372, 1
  %vm381 = vcmp.eq.s32.totalorder %v373, 1
  %vm382 = vcmp.eq.s32.totalorder %v374, 1
  %vm383 = vcmp.eq.s32.totalorder %v375, 1
  %vm384 = vcmp.eq.s32.totalorder %v376, 1
  %vm385 = vcmp.eq.s32.totalorder %v377, 1
  %vm386 = vcmp.eq.s32.totalorder %v378, 1
  %vm387 = vmpackc.low %vm379, %vm379
  %vm388 = vmpackc.low %vm380, %vm380
  %vm389 = vmpackc.low %vm381, %vm381
  %vm390 = vmpackc.low %vm382, %vm382
  %vm391 = vmpackc.low %vm383, %vm383
  %vm392 = vmpackc.low %vm384, %vm384
  %vm393 = vmpackc.low %vm385, %vm385
  %vm394 = vmpackc.low %vm386, %vm386
  %v395 = vsel %vm387, 65537, 0
  %v396 = vsel %vm388, 65537, 0
  %v397 = vsel %vm389, 65537, 0
  %v398 = vsel %vm390, 65537, 0
  %v399 = vsel %vm391, 65537, 0
  %v400 = vsel %vm392, 65537, 0
  %v401 = vsel %vm393, 65537, 0
  %v402 = vsel %vm394, 65537, 0
  %v403 = vunpack.c.l.b16 %v395
  %v404 = vunpack.c.l.b16 %v396
  %v405 = vunpack.c.l.b16 %v397
  %v406 = vunpack.c.l.b16 %v398
  %v407 = vunpack.c.l.b16 %v399
  %v408 = vunpack.c.l.b16 %v400
  %v409 = vunpack.c.l.b16 %v401
  %v410 = vunpack.c.l.b16 %v402
  %v411 = vpack.c.b16 %v404, %v403
  %v412 = vpack.c.b16 %v406, %v405
  %v413 = vpack.c.b16 %v408, %v407
  %v414 = vpack.c.b16 %v410, %v409
  %vm415 = vsmask.f32 7424
  %v417 = vshll.u32 %v411, 16
  %v419 = vrot.slane %v417, 1
  %v420 = vshrl.u32 %v411, 16
  %v422 = vor.u32 %v420, %v419
  %v424 = vshll.u32 %v412, 16
  %v426 = vrot.slane %v424, 1
  %v427 = vsel %vm415, %v422, %v426
  %v428 = vshrl.u32 %v412, 16
  %v430 = vor.u32 %v428, %v426
  %v432 = vshll.u32 %v413, 16
  %v434 = vrot.slane %v432, 1
  %v435 = vsel %vm415, %v430, %v434
  %v436 = vshrl.u32 %v413, 16
  %v438 = vor.u32 %v436, %v434
  %v440 = vshll.u32 %v414, 16
  %v442 = vrot.slane %v440, 1
  %v443 = vsel %vm415, %v438, %v442
  %v444 = vshrl.u32 %v414, 16
  %v446 = vor.u32 %v444, %v442
  %vm447 = vcmp.ne.s16.totalorder %v419, 0
  %vm448 = vcmp.ne.s16.totalorder %v427, 0
  %vm449 = vcmp.ne.s16.totalorder %v435, 0
  %vm450 = vcmp.ne.s16.totalorder %v443, 0
  %vm451 = vcmp.ne.s16.totalorder %v446, 0
  %v452 = vsel %vm447, %v358, 0
  %v453 = vsel %vm448, %v359, 0
  %v454 = vsel %vm449, %v360, 0
  %v455 = vsel %vm450, %v361, 0
  %v456 = vsel %vm451, %v362, 0
  %v457 = vld [vmem:[#allocation2 + $0x8] sm:$0xff]
  %v458 = vld [vmem:[#allocation2 + $0x10] sm:$0xff]
  %v459 = vld [vmem:[#allocation2 + $0x18] sm:$0xff]
  %v460 = vld [vmem:[#allocation2 + $0x20] sm:$0xff]
  %v461 = vld [vmem:[#allocation2 + $0x28] sm:$0x1]
  %vm462 = vcmp.lt.s32.totalorder %v141, 15
  %vm463 = vcmp.lt.s32.totalorder %v142, 15
  %vm464 = vcmp.lt.s32.totalorder %v143, 15
  %vm465 = vcmp.lt.s32.totalorder %v144, 15
  %vm466 = vcmp.lt.s32.totalorder %v145, 15
  %vm467 = vcmp.lt.s32.totalorder %v146, 15
  %vm468 = vcmp.lt.s32.totalorder %v147, 15
  %vm469 = vcmp.lt.s32.totalorder %v148, 15
  %v470 = vsel %vm462, 1, 0
  %v471 = vsel %vm463, 1, 0
  %v472 = vsel %vm464, 1, 0
  %v473 = vsel %vm465, 1, 0
  %v474 = vsel %vm466, 1, 0
  %v475 = vsel %vm467, 1, 0
  %v476 = vsel %vm468, 1, 0
  %v477 = vsel %vm469, 1, 0
  %vm478 = vcmp.eq.s32.totalorder %v470, 1
  %vm479 = vcmp.eq.s32.totalorder %v471, 1
  %vm480 = vcmp.eq.s32.totalorder %v472, 1
  %vm481 = vcmp.eq.s32.totalorder %v473, 1
  %vm482 = vcmp.eq.s32.totalorder %v474, 1
  %vm483 = vcmp.eq.s32.totalorder %v475, 1
  %vm484 = vcmp.eq.s32.totalorder %v476, 1
  %vm485 = vcmp.eq.s32.totalorder %v477, 1
  %vm486 = vmpackc.low %vm478, %vm478
  %vm487 = vmpackc.low %vm479, %vm479
  %vm488 = vmpackc.low %vm480, %vm480
  %vm489 = vmpackc.low %vm481, %vm481
  %vm490 = vmpackc.low %vm482, %vm482
  %vm491 = vmpackc.low %vm483, %vm483
  %vm492 = vmpackc.low %vm484, %vm484
  %vm493 = vmpackc.low %vm485, %vm485
  %v494 = vsel %vm486, 65537, 0
  %v495 = vsel %vm487, 65537, 0
  %v496 = vsel %vm488, 65537, 0
  %v497 = vsel %vm489, 65537, 0
  %v498 = vsel %vm490, 65537, 0
  %v499 = vsel %vm491, 65537, 0
  %v500 = vsel %vm492, 65537, 0
  %v501 = vsel %vm493, 65537, 0
  %v502 = vunpack.c.l.b16 %v494
  %v503 = vunpack.c.l.b16 %v495
  %v504 = vunpack.c.l.b16 %v496
  %v505 = vunpack.c.l.b16 %v497
  %v506 = vunpack.c.l.b16 %v498
  %v507 = vunpack.c.l.b16 %v499
  %v508 = vunpack.c.l.b16 %v500
  %v509 = vunpack.c.l.b16 %v501
  %v510 = vpack.c.b16 %v503, %v502
  %v511 = vpack.c.b16 %v505, %v504
  %v512 = vpack.c.b16 %v507, %v506
  %v513 = vpack.c.b16 %v509, %v508
  %vm514 = vsmask.f32 256
  %v516 = vshrl.u32 %v510, 16
  %v518 = vrot.slane %v516, 7
  %v519 = vshll.u32 %v510, 16
  %v521 = vor.u32 %v518, %v519
  %v523 = vshrl.u32 %v511, 16
  %v525 = vrot.slane %v523, 7
  %v526 = vshll.u32 %v511, 16
  %v528 = vor.u32 %v525, %v526
  %v529 = vsel %vm514, %v518, %v528
  %v531 = vshrl.u32 %v512, 16
  %v533 = vrot.slane %v531, 7
  %v534 = vshll.u32 %v512, 16
  %v536 = vor.u32 %v533, %v534
  %v537 = vsel %vm514, %v525, %v536
  %v539 = vshrl.u32 %v513, 16
  %v541 = vrot.slane %v539, 7
  %v542 = vshll.u32 %v513, 16
  %v544 = vor.u32 %v541, %v542
  %v545 = vsel %vm514, %v533, %v544
  %vm546 = vcmp.ne.s16.totalorder %v521, 0
  %vm547 = vcmp.ne.s16.totalorder %v529, 0
  %vm548 = vcmp.ne.s16.totalorder %v537, 0
  %vm549 = vcmp.ne.s16.totalorder %v545, 0
  %vm550 = vcmp.ne.s16.totalorder %v541, 0
  %v551 = vsel %vm546, %v457, 0
  %v552 = vsel %vm547, %v458, 0
  %v553 = vsel %vm548, %v459, 0
  %v554 = vsel %vm549, %v460, 0
  %v555 = vsel %vm550, %v461, 0
  %v557 = vshll.u32 %v359, 16
  %v559 = vrot.slane %v557, 1
  %v560 = vshrl.u32 %v359, 16
  %v562 = vor.u32 %v560, %v559
  %v564 = vshll.u32 %v360, 16
  %v566 = vrot.slane %v564, 1
  %v567 = vsel %vm415, %v562, %v566
  %v568 = vshrl.u32 %v360, 16
  %v570 = vor.u32 %v568, %v566
  %v572 = vshll.u32 %v361, 16
  %v574 = vrot.slane %v572, 1
  %v575 = vsel %vm415, %v570, %v574
  %v576 = vshrl.u32 %v361, 16
  %v578 = vor.u32 %v576, %v574
  %v580 = vshll.u32 %v362, 16
  %v582 = vrot.slane %v580, 1
  %v583 = vsel %vm415, %v578, %v582
  %v584 = vshrl.u32 %v362, 16
  %v586 = vor.u32 %v584, %v582
  %vm592 = vcmask 1046528
  %v593 = vrot.slane %v551, 1
  %v594 = vrot.slane %v552, 1
  %v595 = vsel %vm592, %v593, %v594
  %v596 = vrot.slane %v553, 1
  %v597 = vsel %vm592, %v594, %v596
  %v598 = vrot.slane %v554, 1
  %v599 = vsel %vm592, %v596, %v598
  %v600 = vrot.slane %v555, 1
  %v601 = vsel %vm592, %v598, %v600
  %v603 = vlaneseq
  %v604 = vshrl.u32 %v603, 7
  %v605 = vsub.s32 0, %v604
  %v606 = vrot.slane %v353, %v605
  %v609 = vshrl.u32 %v452, 16
  %v611 = vrot.slane %v609, 7
  %v613 = vshrl.u32 %v453, 16
  %v615 = vrot.slane %v613, 7
  %v616 = vshll.u32 %v453, 16
  %v618 = vor.u32 %v615, %v616
  %v619 = vsel %vm514, %v611, %v618
  %v621 = vshrl.u32 %v559, 16
  %v623 = vrot.slane %v621, 7
  %v625 = vshrl.u32 %v567, 16
  %v627 = vrot.slane %v625, 7
  %v628 = vshll.u32 %v567, 16
  %v630 = vor.u32 %v627, %v628
  %v631 = vsel %vm514, %v623, %v630
  %v633 = vshrl.u32 %v593, 16
  %v635 = vrot.slane %v633, 7
  %v637 = vshrl.u32 %v595, 16
  %v639 = vrot.slane %v637, 7
  %v640 = vshll.u32 %v595, 16
  %v642 = vor.u32 %v639, %v640
  %v643 = vsel %vm514, %v635, %v642
  %v645 = vshrl.u32 %v454, 16
  %v647 = vrot.slane %v645, 7
  %v648 = vshll.u32 %v454, 16
  %v650 = vor.u32 %v647, %v648
  %v651 = vsel %vm514, %v615, %v650
  %v653 = vshrl.u32 %v575, 16
  %v655 = vrot.slane %v653, 7
  %v656 = vshll.u32 %v575, 16
  %v658 = vor.u32 %v655, %v656
  %v659 = vsel %vm514, %v627, %v658
  %v661 = vshrl.u32 %v597, 16
  %v663 = vrot.slane %v661, 7
  %v664 = vshll.u32 %v597, 16
  %v666 = vor.u32 %v663, %v664
  %v667 = vsel %vm514, %v639, %v666
  %v669 = vshrl.u32 %v455, 16
  %v671 = vrot.slane %v669, 7
  %v672 = vshll.u32 %v455, 16
  %v674 = vor.u32 %v671, %v672
  %v675 = vsel %vm514, %v647, %v674
  %v677 = vshrl.u32 %v583, 16
  %v679 = vrot.slane %v677, 7
  %v680 = vshll.u32 %v583, 16
  %v682 = vor.u32 %v679, %v680
  %v683 = vsel %vm514, %v655, %v682
  %v685 = vshrl.u32 %v599, 16
  %v687 = vrot.slane %v685, 7
  %v688 = vshll.u32 %v599, 16
  %v690 = vor.u32 %v687, %v688
  %v691 = vsel %vm514, %v663, %v690
  %v693 = vshrl.u32 %v456, 16
  %v695 = vrot.slane %v693, 7
  %v696 = vshll.u32 %v456, 16
  %v698 = vor.u32 %v695, %v696
  %v699 = vsel %vm514, %v671, %v698
  %v701 = vshrl.u32 %v586, 16
  %v703 = vrot.slane %v701, 7
  %v704 = vshll.u32 %v586, 16
  %v706 = vor.u32 %v703, %v704
  %v707 = vsel %vm514, %v679, %v706
  %v709 = vshrl.u32 %v601, 16
  %v711 = vrot.slane %v709, 7
  %v712 = vshll.u32 %v601, 16
  %v714 = vor.u32 %v711, %v712
  %v715 = vsel %vm514, %v687, %v714
  %v776 = vunpack.c.l.b16 %v305
  %v777 = vunpack.c.l.b16 %v306
  %v778 = vunpack.c.l.b16 %v307
  %v779 = vunpack.c.l.b16 %v308
  %v780 = vunpack.c.l.b16 %v309
  %v781 = vunpack.c.l.b16 %v310
  %v782 = vunpack.c.l.b16 %v311
  %v783 = vunpack.c.l.b16 %v312
  %v784 = vunpack.c.l.b16 %v313
  %v785 = vunpack.c.l.b16 %v314
  %v786 = vunpack.c.l.b16 %v315
  %v787 = vunpack.c.l.b16 %v316
  %v788 = vunpack.c.l.b16 %v317
  %v789 = vunpack.c.l.b16 %v318
  %v790 = vunpack.c.l.b16 %v319
  %v791 = vunpack.c.l.b16 %v320
  %v792 = vunpack.c.l.b16 %v321
  %v793 = vunpack.c.l.b16 %v322
  %v794 = vunpack.c.l.b16 %v323
  %v795 = vunpack.c.l.b16 %v324
  %v796 = vunpack.c.l.b16 %v325
  %v797 = vunpack.c.l.b16 %v326
  %v798 = vunpack.c.l.b16 %v327
  %v799 = vunpack.c.l.b16 %v328
  %v800 = vunpack.c.l.b16 %v329
  %v801 = vunpack.c.l.b16 %v330
  %v802 = vunpack.c.l.b16 %v331
  %v803 = vunpack.c.l.b16 %v332
  %v804 = vunpack.c.l.b16 %v333
  %v805 = vunpack.c.l.b16 %v334
  %v806 = vunpack.c.l.b16 %v335
  %v807 = vunpack.c.l.b16 %v336
  %v808 = vunpack.c.l.b16 %v337
  %v809 = vunpack.c.l.b16 %v338
  %v810 = vunpack.c.l.b16 %v339
  %v811 = vunpack.c.l.b16 %v340
  %v812 = vunpack.c.l.b16 %v341
  %v813 = vunpack.c.l.b16 %v342
  %v814 = vunpack.c.l.b16 %v343
  %v815 = vunpack.c.l.b16 %v344
  %v816 = vunpack.c.l.b16 %v345
  %v817 = vunpack.c.l.b16 %v346
  %v818 = vunpack.c.l.b16 %v347
  %v819 = vunpack.c.l.b16 %v348
  %v820 = vunpack.c.l.b16 %v349
  %v821 = vunpack.c.l.b16 %v350
  %v822 = vunpack.c.l.b16 %v351
  %v823 = vunpack.c.l.b16 %v352
  %v824 = vpack.c.b16 %v777, %v776
  %v825 = vpack.c.b16 %v779, %v778
  %v826 = vpack.c.b16 %v781, %v780
  %v827 = vpack.c.b16 %v783, %v782
  %v828 = vpack.c.b16 %v785, %v784
  %v829 = vpack.c.b16 %v787, %v786
  %v830 = vpack.c.b16 %v789, %v788
  %v831 = vpack.c.b16 %v791, %v790
  %v832 = vpack.c.b16 %v793, %v792
  %v833 = vpack.c.b16 %v795, %v794
  %v834 = vpack.c.b16 %v797, %v796
  %v835 = vpack.c.b16 %v799, %v798
  %v836 = vpack.c.b16 %v801, %v800
  %v837 = vpack.c.b16 %v803, %v802
  %v838 = vpack.c.b16 %v805, %v804
  %v839 = vpack.c.b16 %v807, %v806
  %v840 = vpack.c.b16 %v809, %v808
  %v841 = vpack.c.b16 %v811, %v810
  %v842 = vpack.c.b16 %v813, %v812
  %v843 = vpack.c.b16 %v815, %v814
  %v844 = vpack.c.b16 %v817, %v816
  %v845 = vpack.c.b16 %v819, %v818
  %v846 = vpack.c.b16 %v821, %v820
  %v847 = vpack.c.b16 %v823, %v822
  %872 = vmatprep.subr.bf16.mxu0 0
  %873 = vmatpush1.bf16.msra.mxu0 %v824
  %874 = vmatprep.subr.bf16.mxu0 0
  %875 = vmatpush1.bf16.msra.mxu0 %v825
  %876 = vmatprep.subr.bf16.mxu0 0
  %877 = vmatpush1.bf16.msra.mxu0 %v826
  %878 = vmatprep.subr.bf16.mxu0 0
  %879 = vmatpush1.bf16.msra.mxu0 %v827
  %880 = vmatprep.subr.bf16.mxu0 0
  %881 = vmatpush1.bf16.msra.mxu0 %v828
  %882 = vmatprep.subr.bf16.mxu0 0
  %883 = vmatpush1.bf16.msra.mxu0 %v829
  %884 = vmatprep.subr.bf16.mxu0 0
  %885 = vmatpush1.bf16.msra.mxu0 %v830
  %886 = vmatprep.subr.bf16.mxu0 0
  %887 = vmatpush1.bf16.msra.mxu0 %v831
  %888 = vmatprep.subr.bf16.mxu0 0
  %889 = vmatpush1.bf16.msra.mxu0 %v832
  %890 = vmatprep.subr.bf16.mxu0 0
  %891 = vmatpush1.bf16.msra.mxu0 %v833
  %892 = vmatprep.subr.bf16.mxu0 0
  %893 = vmatpush1.bf16.msra.mxu0 %v834
  %894 = vmatprep.subr.bf16.mxu0 0
  %895 = vmatpush1.bf16.msra.mxu0 %v835
  %896 = vmatprep.subr.bf16.mxu0 0
  %897 = vmatpush1.bf16.msra.mxu0 %v836
  %898 = vmatprep.subr.bf16.mxu0 0
  %899 = vmatpush1.bf16.msra.mxu0 %v837
  %900 = vmatprep.subr.bf16.mxu0 0
  %901 = vmatpush1.bf16.msra.mxu0 %v838
  %902 = vmatprep.subr.bf16.mxu0 0
  %903 = vmatpush1.bf16.msra.mxu0 %v839
  %904 = vmatprep.mubr.bf16.mxu0 %v631
  %905 = vmatmul.mubr.bf16.gmra.mrb[0].mxu0 %v619
  %v906 = vpop.f32.mrb[0].mxu0
  %v907 = vadd.f32 %v606, %v906
  %v908 = vpop.f32.mrb[0].mxu0
  %v909 = vpop.f32.mrb[0].mxu0
  %v910 = vadd.f32 %v606, %v909
  %v911 = vpop.f32.mrb[0].mxu0
  %912 = vmatprep.mubr.bf16.mxu0 %v659
  %913 = vmatmul.mubr.bf16.gmra.mrb[0].mxu0 %v651
  %v914 = vpop.f32.mrb[0].mxu0
  %v915 = vadd.f32 %v606, %v914
  %v916 = vpop.f32.mrb[0].mxu0
  %v917 = vpop.f32.mrb[0].mxu0
  %v918 = vadd.f32 %v606, %v917
  %v919 = vpop.f32.mrb[0].mxu0
  %920 = vmatprep.mubr.bf16.mxu0 %v683
  %921 = vmatmul.mubr.bf16.gmra.mrb[0].mxu0 %v675
  %v922 = vpop.f32.mrb[0].mxu0
  %v923 = vadd.f32 %v606, %v922
  %v924 = vpop.f32.mrb[0].mxu0
  %v925 = vpop.f32.mrb[0].mxu0
  %v926 = vadd.f32 %v606, %v925
  %v927 = vpop.f32.mrb[0].mxu0
  %928 = vmatprep.mubr.bf16.mxu0 %v707
  %929 = vmatmul.mubr.bf16.gmra.mrb[0].mxu0 %v699
  %v930 = vpop.f32.mrb[0].mxu0
  %v931 = vadd.f32 %v606, %v930
  %v932 = vpop.f32.mrb[0].mxu0
  %v933 = vpop.f32.mrb[0].mxu0
  %v934 = vadd.f32 %v606, %v933
  %v935 = vpop.f32.mrb[0].mxu0
  %936 = vdwg.mxu0
  %937 = vmatprep.subr.bf16.mxu0 0
  %938 = vmatpush1.bf16.msra.mxu0 %v840
  %939 = vmatprep.subr.bf16.mxu0 0
  %940 = vmatpush1.bf16.msra.mxu0 %v841
  %941 = vmatprep.subr.bf16.mxu0 0
  %942 = vmatpush1.bf16.msra.mxu0 %v842
  %943 = vmatprep.subr.bf16.mxu0 0
  %944 = vmatpush1.bf16.msra.mxu0 %v843
  %945 = vmatprep.subr.bf16.mxu0 0
  %946 = vmatpush1.bf16.msra.mxu0 %v844
  %947 = vmatprep.subr.bf16.mxu0 0
  %948 = vmatpush1.bf16.msra.mxu0 %v845
  %949 = vmatprep.subr.bf16.mxu0 0
  %950 = vmatpush1.bf16.msra.mxu0 %v846
  %951 = vmatprep.subr.bf16.mxu0 0
  %952 = vmatpush1.bf16.msra.mxu0 %v847
  %953 = vmatprep.subr.bf16.mxu0 0
  %954 = vmatpush1.bf16.msra.mxu0 0
  %955 = vmatprep.subr.bf16.mxu0 0
  %956 = vmatpush1.bf16.msra.mxu0 0
  %957 = vmatprep.subr.bf16.mxu0 0
  %958 = vmatpush1.bf16.msra.mxu0 0
  %959 = vmatprep.subr.bf16.mxu0 0
  %960 = vmatpush1.bf16.msra.mxu0 0
  %961 = vmatprep.subr.bf16.mxu0 0
  %962 = vmatpush1.bf16.msra.mxu0 0
  %963 = vmatprep.subr.bf16.mxu0 0
  %964 = vmatpush1.bf16.msra.mxu0 0
  %965 = vmatprep.subr.bf16.mxu0 0
  %966 = vmatpush1.bf16.msra.mxu0 0
  %967 = vmatprep.subr.bf16.mxu0 0
  %968 = vmatpush1.bf16.msra.mxu0 0
  %969 = vmatprep.mubr.bf16.mxu0 0
  %970 = vmatmul.mubr.bf16.gmra.mrb[0].mxu0 %v643
  %v971 = vpop.f32.mrb[0].mxu0
  %v972 = vadd.f32 %v907, %v971
  %v973 = vpop.f32.mrb[0].mxu0
  %v974 = vpop.f32.mrb[0].mxu0
  %v975 = vadd.f32 %v910, %v974
  %v976 = vpop.f32.mrb[0].mxu0
  %977 = vmatprep.mubr.bf16.mxu0 0
  %978 = vmatmul.mubr.bf16.gmra.mrb[0].mxu0 %v667
  %v979 = vpop.f32.mrb[0].mxu0
  %v980 = vadd.f32 %v915, %v979
  %v981 = vpop.f32.mrb[0].mxu0
  %v982 = vpop.f32.mrb[0].mxu0
  %v983 = vadd.f32 %v918, %v982
  %v984 = vpop.f32.mrb[0].mxu0
  %985 = vmatprep.mubr.bf16.mxu0 0
  %986 = vmatmul.mubr.bf16.gmra.mrb[0].mxu0 %v691
  %v987 = vpop.f32.mrb[0].mxu0
  %v988 = vadd.f32 %v923, %v987
  %v989 = vpop.f32.mrb[0].mxu0
  %v990 = vpop.f32.mrb[0].mxu0
  %v991 = vadd.f32 %v926, %v990
  %v992 = vpop.f32.mrb[0].mxu0
  %993 = vmatprep.mubr.bf16.mxu0 0
  %994 = vmatmul.mubr.bf16.gmra.mrb[0].mxu0 %v715
  %v995 = vpop.f32.mrb[0].mxu0
  %v996 = vadd.f32 %v931, %v995
  %v997 = vpop.f32.mrb[0].mxu0
  %v998 = vpop.f32.mrb[0].mxu0
  %v999 = vadd.f32 %v934, %v998
  %v1000 = vpop.f32.mrb[0].mxu0
  %1001 = vdwg.mxu0
  %v1002 = vld [vmem:[%s5] sm:$0x1]
  %v1003 = vld [vmem:[%s6] sm:$0x1]
  %vm1004 = vcmask 64512
  %v1005 = vsel %vm1004, %v972, 0.0
  %1006 = vadd.xlane.f32.xlu0 %v1005
  %v1007 = vpop.xlane.xlu0 %1006
  %v1008 = vsel %vm1004, %v975, 0.0
  %1009 = vadd.xlane.f32.xlu0 %v1008
  %v1010 = vpop.xlane.xlu0 %1009
  %v1011 = vsel %vm1004, %v980, 0.0
  %1012 = vadd.xlane.f32.xlu0 %v1011
  %v1013 = vpop.xlane.xlu0 %1012
  %v1014 = vsel %vm1004, %v983, 0.0
  %1015 = vadd.xlane.f32.xlu0 %v1014
  %v1016 = vpop.xlane.xlu0 %1015
  %v1017 = vsel %vm1004, %v988, 0.0
  %1018 = vadd.xlane.f32.xlu0 %v1017
  %v1019 = vpop.xlane.xlu0 %1018
  %v1020 = vsel %vm1004, %v991, 0.0
  %1021 = vadd.xlane.f32.xlu0 %v1020
  %v1022 = vpop.xlane.xlu0 %1021
  %v1023 = vsel %vm1004, %v996, 0.0
  %1024 = vadd.xlane.f32.xlu0 %v1023
  %v1025 = vpop.xlane.xlu0 %1024
  %v1026 = vsel %vm1004, %v999, 0.0
  %1027 = vadd.xlane.f32.xlu0 %v1026
  %v1028 = vpop.xlane.xlu0 %1027
  %v1029 = vrcp.pop 8.0
  %v1030 = vmul.f32 %v1007, %v1029
  %v1031 = vmul.f32 %v1010, %v1029
  %v1032 = vmul.f32 %v1013, %v1029
  %v1033 = vmul.f32 %v1016, %v1029
  %v1034 = vmul.f32 %v1019, %v1029
  %v1035 = vmul.f32 %v1022, %v1029
  %v1036 = vmul.f32 %v1025, %v1029
  %v1037 = vmul.f32 %v1028, %v1029
  %v1038 = vsub.f32 %v972, %v1030
  %v1039 = vsub.f32 %v975, %v1031
  %v1040 = vsub.f32 %v980, %v1032
  %v1041 = vsub.f32 %v983, %v1033
  %v1042 = vsub.f32 %v988, %v1034
  %v1043 = vsub.f32 %v991, %v1035
  %v1044 = vsub.f32 %v996, %v1036
  %v1045 = vsub.f32 %v999, %v1037
  %v1046 = vmul.f32 %v1038, %v1038
  %v1047 = vmul.f32 %v1039, %v1039
  %v1048 = vmul.f32 %v1040, %v1040
  %v1049 = vmul.f32 %v1041, %v1041
  %v1050 = vmul.f32 %v1042, %v1042
  %v1051 = vmul.f32 %v1043, %v1043
  %v1052 = vmul.f32 %v1044, %v1044
  %v1053 = vmul.f32 %v1045, %v1045
  %v1054 = vsel %vm1004, %v1046, 0.0
  %1055 = vadd.xlane.f32.xlu0 %v1054
  %v1056 = vpop.xlane.xlu0 %1055
  %v1057 = vsel %vm1004, %v1047, 0.0
  %1058 = vadd.xlane.f32.xlu0 %v1057
  %v1059 = vpop.xlane.xlu0 %1058
  %v1060 = vsel %vm1004, %v1048, 0.0
  %1061 = vadd.xlane.f32.xlu0 %v1060
  %v1062 = vpop.xlane.xlu0 %1061
  %v1063 = vsel %vm1004, %v1049, 0.0
  %1064 = vadd.xlane.f32.xlu0 %v1063
  %v1065 = vpop.xlane.xlu0 %1064
  %v1066 = vsel %vm1004, %v1050, 0.0
  %1067 = vadd.xlane.f32.xlu0 %v1066
  %v1068 = vpop.xlane.xlu0 %1067
  %v1069 = vsel %vm1004, %v1051, 0.0
  %1070 = vadd.xlane.f32.xlu0 %v1069
  %v1071 = vpop.xlane.xlu0 %1070
  %v1072 = vsel %vm1004, %v1052, 0.0
  %1073 = vadd.xlane.f32.xlu0 %v1072
  %v1074 = vpop.xlane.xlu0 %1073
  %v1075 = vsel %vm1004, %v1053, 0.0
  %1076 = vadd.xlane.f32.xlu0 %v1075
  %v1077 = vpop.xlane.xlu0 %1076
  %v1078 = vmul.f32 %v1056, %v1029
  %v1079 = vmul.f32 %v1059, %v1029
  %v1080 = vmul.f32 %v1062, %v1029
  %v1081 = vmul.f32 %v1065, %v1029
  %v1082 = vmul.f32 %v1068, %v1029
  %v1083 = vmul.f32 %v1071, %v1029
  %v1084 = vmul.f32 %v1074, %v1029
  %v1085 = vmul.f32 %v1077, %v1029
  %v1086 = vadd.f32 %v1078, 1e-05
  %v1087 = vadd.f32 %v1079, 1e-05
  %v1088 = vadd.f32 %v1080, 1e-05
  %v1089 = vadd.f32 %v1081, 1e-05
  %v1090 = vadd.f32 %v1082, 1e-05
  %v1091 = vadd.f32 %v1083, 1e-05
  %v1092 = vadd.f32 %v1084, 1e-05
  %v1093 = vadd.f32 %v1085, 1e-05
  %v1094 = vrsqrt.pop %v1086
  %v1095 = vrsqrt.pop %v1087
  %v1096 = vrsqrt.pop %v1088
  %v1097 = vrsqrt.pop %v1089
  %v1098 = vrsqrt.pop %v1090
  %v1099 = vrsqrt.pop %v1091
  %v1100 = vrsqrt.pop %v1092
  %v1101 = vrsqrt.pop %v1093
  %v1102 = vmul.f32 %v1038, %v1094
  %v1103 = vmul.f32 %v1039, %v1095
  %v1104 = vmul.f32 %v1040, %v1096
  %v1105 = vmul.f32 %v1041, %v1097
  %v1106 = vmul.f32 %v1042, %v1098
  %v1107 = vmul.f32 %v1043, %v1099
  %v1108 = vmul.f32 %v1044, %v1100
  %v1109 = vmul.f32 %v1045, %v1101
  %v1111 = vlaneseq
  %v1112 = vshrl.u32 %v1111, 7
  %v1113 = vsub.s32 0, %v1112
  %v1114 = vrot.slane %v1002, %v1113
  %v1116 = vmul.f32 %v1102, %v1114
  %v1117 = vmul.f32 %v1103, %v1114
  %v1118 = vmul.f32 %v1104, %v1114
  %v1119 = vmul.f32 %v1105, %v1114
  %v1120 = vmul.f32 %v1106, %v1114
  %v1121 = vmul.f32 %v1107, %v1114
  %v1122 = vmul.f32 %v1108, %v1114
  %v1123 = vmul.f32 %v1109, %v1114
  %v1125 = vlaneseq
  %v1126 = vshrl.u32 %v1125, 7
  %v1127 = vsub.s32 0, %v1126
  %v1128 = vrot.slane %v1003, %v1127
  %v1130 = vadd.f32 %v1116, %v1128
  %v1131 = vadd.f32 %v1117, %v1128
  %v1132 = vadd.f32 %v1118, %v1128
  %v1133 = vadd.f32 %v1119, %v1128
  %v1134 = vadd.f32 %v1120, %v1128
  %v1135 = vadd.f32 %v1121, %v1128
  %v1136 = vadd.f32 %v1122, %v1128
  %v1137 = vadd.f32 %v1123, %v1128
  %v1138 = vmax.f32 %v1130, 0.0
  %v1139 = vmax.f32 %v1131, 0.0
  %v1140 = vmax.f32 %v1132, 0.0
  %v1141 = vmax.f32 %v1133, 0.0
  %v1142 = vmax.f32 %v1134, 0.0
  %v1143 = vmax.f32 %v1135, 0.0
  %v1144 = vmax.f32 %v1136, 0.0
  %v1145 = vmax.f32 %v1137, 0.0
  %v1146 = vpack.c.bf16 %v1139, %v1138
  %v1147 = vpack.c.bf16 %v1141, %v1140
  %v1148 = vpack.c.bf16 %v1143, %v1142
  %v1149 = vpack.c.bf16 %v1145, %v1144
  %v1150 = vld [vmem:[%s7] sm:$0xf]
  %v1151 = vld [vmem:[%s7 + $0x4] sm:$0xf]
  %v1152 = vld [vmem:[%s7 + $0x8] sm:$0xf]
  %v1153 = vld [vmem:[%s7 + $0xc] sm:$0xf]
  %v1154 = vld [vmem:[%s7 + $0x10] sm:$0xf]
  %v1155 = vld [vmem:[%s7 + $0x14] sm:$0xf]
  %v1156 = vld [vmem:[%s7 + $0x18] sm:$0xf]
  %v1157 = vld [vmem:[%s7 + $0x1c] sm:$0xf]
  %v1158 = vld [vmem:[%s7 + $0x20] sm:$0xf]
  %v1159 = vld [vmem:[%s7 + $0x24] sm:$0xf]
  %v1160 = vld [vmem:[%s7 + $0x28] sm:$0xf]
  %v1161 = vld [vmem:[%s7 + $0x2c] sm:$0xf]
  %v1162 = vld [vmem:[%s7 + $0x30] sm:$0xf]
  %v1163 = vld [vmem:[%s7 + $0x34] sm:$0xf]
  %v1164 = vld [vmem:[%s7 + $0x38] sm:$0xf]
  %v1165 = vld [vmem:[%s7 + $0x3c] sm:$0xf]
  %v1166 = vld [vmem:[%s7 + $0x40] sm:$0xf]
  %v1167 = vld [vmem:[%s7 + $0x44] sm:$0xf]
  %v1168 = vld [vmem:[%s7 + $0x48] sm:$0xf]
  %v1169 = vld [vmem:[%s7 + $0x4c] sm:$0xf]
  %v1170 = vld [vmem:[%s7 + $0x50] sm:$0xf]
  %v1171 = vld [vmem:[%s7 + $0x54] sm:$0xf]
  %v1172 = vld [vmem:[%s7 + $0x58] sm:$0xf]
  %v1173 = vld [vmem:[%s7 + $0x5c] sm:$0xf]
  %v1174 = vld [vmem:[%s7 + $0x60] sm:$0xf]
  %v1175 = vld [vmem:[%s7 + $0x64] sm:$0xf]
  %v1176 = vld [vmem:[%s7 + $0x68] sm:$0xf]
  %v1177 = vld [vmem:[%s7 + $0x6c] sm:$0xf]
  %v1178 = vld [vmem:[%s7 + $0x70] sm:$0xf]
  %v1179 = vld [vmem:[%s7 + $0x74] sm:$0xf]
  %v1180 = vld [vmem:[%s7 + $0x78] sm:$0xf]
  %v1181 = vld [vmem:[%s7 + $0x7c] sm:$0xf]
  %v1182 = vld [vmem:[%s7 + $0x80] sm:$0xf]
  %v1183 = vld [vmem:[%s7 + $0x84] sm:$0xf]
  %v1184 = vld [vmem:[%s7 + $0x88] sm:$0xf]
  %v1185 = vld [vmem:[%s7 + $0x8c] sm:$0xf]
  %v1186 = vld [vmem:[%s7 + $0x90] sm:$0xf]
  %v1187 = vld [vmem:[%s7 + $0x94] sm:$0xf]
  %v1188 = vld [vmem:[%s7 + $0x98] sm:$0xf]
  %v1189 = vld [vmem:[%s7 + $0x9c] sm:$0xf]
  %v1190 = vld [vmem:[%s7 + $0xa0] sm:$0xf]
  %v1191 = vld [vmem:[%s7 + $0xa4] sm:$0xf]
  %v1192 = vld [vmem:[%s7 + $0xa8] sm:$0xf]
  %v1193 = vld [vmem:[%s7 + $0xac] sm:$0xf]
  %v1194 = vld [vmem:[%s7 + $0xb0] sm:$0xf]
  %v1195 = vld [vmem:[%s7 + $0xb4] sm:$0xf]
  %v1196 = vld [vmem:[%s7 + $0xb8] sm:$0xf]
  %v1197 = vld [vmem:[%s7 + $0xbc] sm:$0xf]
  %v1198 = vld [vmem:[%s8] sm:$0x1]
  %1199 = vst.msk [vmem:[#allocation2 + $0x8] sm:$0xff] %vm1004, %v1146
  %1200 = vst.msk [vmem:[#allocation2 + $0x10] sm:$0xff] %vm1004, %v1147
  %1201 = vst.msk [vmem:[#allocation2 + $0x18] sm:$0xff] %vm1004, %v1148
  %1202 = vst.msk [vmem:[#allocation2 + $0x20] sm:$0xff] %vm1004, %v1149
  %v1203 = vld [vmem:[#allocation2] sm:$0x80]
  %v1204 = vld [vmem:[#allocation2 + $0x8] sm:$0xff]
  %v1205 = vld [vmem:[#allocation2 + $0x10] sm:$0xff]
  %v1206 = vld [vmem:[#allocation2 + $0x18] sm:$0xff]
  %v1207 = vld [vmem:[#allocation2 + $0x20] sm:$0xff]
  %v1208 = vsel %vm447, %v1203, 0
  %v1209 = vsel %vm448, %v1204, 0
  %v1210 = vsel %vm449, %v1205, 0
  %v1211 = vsel %vm450, %v1206, 0
  %v1212 = vsel %vm451, %v1207, 0
  %v1213 = vld [vmem:[#allocation2 + $0x8] sm:$0xff]
  %v1214 = vld [vmem:[#allocation2 + $0x10] sm:$0xff]
  %v1215 = vld [vmem:[#allocation2 + $0x18] sm:$0xff]
  %v1216 = vld [vmem:[#allocation2 + $0x20] sm:$0xff]
  %v1217 = vld [vmem:[#allocation2 + $0x28] sm:$0x1]
  %v1218 = vsel %vm546, %v1213, 0
  %v1219 = vsel %vm547, %v1214, 0
  %v1220 = vsel %vm548, %v1215, 0
  %v1221 = vsel %vm549, %v1216, 0
  %v1222 = vsel %vm550, %v1217, 0
  %v1224 = vshll.u32 %v1204, 16
  %v1226 = vrot.slane %v1224, 1
  %v1227 = vshrl.u32 %v1204, 16
  %v1229 = vor.u32 %v1227, %v1226
  %v1231 = vshll.u32 %v1205, 16
  %v1233 = vrot.slane %v1231, 1
  %v1234 = vsel %vm415, %v1229, %v1233
  %v1235 = vshrl.u32 %v1205, 16
  %v1237 = vor.u32 %v1235, %v1233
  %v1239 = vshll.u32 %v1206, 16
  %v1241 = vrot.slane %v1239, 1
  %v1242 = vsel %vm415, %v1237, %v1241
  %v1243 = vshrl.u32 %v1206, 16
  %v1245 = vor.u32 %v1243, %v1241
  %v1247 = vshll.u32 %v1207, 16
  %v1249 = vrot.slane %v1247, 1
  %v1250 = vsel %vm415, %v1245, %v1249
  %v1251 = vshrl.u32 %v1207, 16
  %v1253 = vor.u32 %v1251, %v1249
  %v1259 = vrot.slane %v1218, 1
  %v1260 = vrot.slane %v1219, 1
  %v1261 = vsel %vm592, %v1259, %v1260
  %v1262 = vrot.slane %v1220, 1
  %v1263 = vsel %vm592, %v1260, %v1262
  %v1264 = vrot.slane %v1221, 1
  %v1265 = vsel %vm592, %v1262, %v1264
  %v1266 = vrot.slane %v1222, 1
  %v1267 = vsel %vm592, %v1264, %v1266
  %v1269 = vlaneseq
  %v1270 = vshrl.u32 %v1269, 7
  %v1271 = vsub.s32 0, %v1270
  %v1272 = vrot.slane %v1198, %v1271
  %v1275 = vshrl.u32 %v1208, 16
  %v1277 = vrot.slane %v1275, 7
  %v1279 = vshrl.u32 %v1209, 16
  %v1281 = vrot.slane %v1279, 7
  %v1282 = vshll.u32 %v1209, 16
  %v1284 = vor.u32 %v1281, %v1282
  %v1285 = vsel %vm514, %v1277, %v1284
  %v1287 = vshrl.u32 %v1226, 16
  %v1289 = vrot.slane %v1287, 7
  %v1291 = vshrl.u32 %v1234, 16
  %v1293 = vrot.slane %v1291, 7
  %v1294 = vshll.u32 %v1234, 16
  %v1296 = vor.u32 %v1293, %v1294
  %v1297 = vsel %vm514, %v1289, %v1296
  %v1299 = vshrl.u32 %v1259, 16
  %v1301 = vrot.slane %v1299, 7
  %v1303 = vshrl.u32 %v1261, 16
  %v1305 = vrot.slane %v1303, 7
  %v1306 = vshll.u32 %v1261, 16
  %v1308 = vor.u32 %v1305, %v1306
  %v1309 = vsel %vm514, %v1301, %v1308
  %v1311 = vshrl.u32 %v1210, 16
  %v1313 = vrot.slane %v1311, 7
  %v1314 = vshll.u32 %v1210, 16
  %v1316 = vor.u32 %v1313, %v1314
  %v1317 = vsel %vm514, %v1281, %v1316
  %v1319 = vshrl.u32 %v1242, 16
  %v1321 = vrot.slane %v1319, 7
  %v1322 = vshll.u32 %v1242, 16
  %v1324 = vor.u32 %v1321, %v1322
  %v1325 = vsel %vm514, %v1293, %v1324
  %v1327 = vshrl.u32 %v1263, 16
  %v1329 = vrot.slane %v1327, 7
  %v1330 = vshll.u32 %v1263, 16
  %v1332 = vor.u32 %v1329, %v1330
  %v1333 = vsel %vm514, %v1305, %v1332
  %v1335 = vshrl.u32 %v1211, 16
  %v1337 = vrot.slane %v1335, 7
  %v1338 = vshll.u32 %v1211, 16
  %v1340 = vor.u32 %v1337, %v1338
  %v1341 = vsel %vm514, %v1313, %v1340
  %v1343 = vshrl.u32 %v1250, 16
  %v1345 = vrot.slane %v1343, 7
  %v1346 = vshll.u32 %v1250, 16
  %v1348 = vor.u32 %v1345, %v1346
  %v1349 = vsel %vm514, %v1321, %v1348
  %v1351 = vshrl.u32 %v1265, 16
  %v1353 = vrot.slane %v1351, 7
  %v1354 = vshll.u32 %v1265, 16
  %v1356 = vor.u32 %v1353, %v1354
  %v1357 = vsel %vm514, %v1329, %v1356
  %v1359 = vshrl.u32 %v1212, 16
  %v1361 = vrot.slane %v1359, 7
  %v1362 = vshll.u32 %v1212, 16
  %v1364 = vor.u32 %v1361, %v1362
  %v1365 = vsel %vm514, %v1337, %v1364
  %v1367 = vshrl.u32 %v1253, 16
  %v1369 = vrot.slane %v1367, 7
  %v1370 = vshll.u32 %v1253, 16
  %v1372 = vor.u32 %v1369, %v1370
  %v1373 = vsel %vm514, %v1345, %v1372
  %v1375 = vshrl.u32 %v1267, 16
  %v1377 = vrot.slane %v1375, 7
  %v1378 = vshll.u32 %v1267, 16
  %v1380 = vor.u32 %v1377, %v1378
  %v1381 = vsel %vm514, %v1353, %v1380
  %v1442 = vunpack.c.l.b16 %v1150
  %v1443 = vunpack.c.l.b16 %v1151
  %v1444 = vunpack.c.l.b16 %v1152
  %v1445 = vunpack.c.l.b16 %v1153
  %v1446 = vunpack.c.l.b16 %v1154
  %v1447 = vunpack.c.l.b16 %v1155
  %v1448 = vunpack.c.l.b16 %v1156
  %v1449 = vunpack.c.l.b16 %v1157
  %v1450 = vunpack.c.l.b16 %v1158
  %v1451 = vunpack.c.l.b16 %v1159
  %v1452 = vunpack.c.l.b16 %v1160
  %v1453 = vunpack.c.l.b16 %v1161
  %v1454 = vunpack.c.l.b16 %v1162
  %v1455 = vunpack.c.l.b16 %v1163
  %v1456 = vunpack.c.l.b16 %v1164
  %v1457 = vunpack.c.l.b16 %v1165
  %v1458 = vunpack.c.l.b16 %v1166
  %v1459 = vunpack.c.l.b16 %v1167
  %v1460 = vunpack.c.l.b16 %v1168
  %v1461 = vunpack.c.l.b16 %v1169
  %v1462 = vunpack.c.l.b16 %v1170
  %v1463 = vunpack.c.l.b16 %v1171
  %v1464 = vunpack.c.l.b16 %v1172
  %v1465 = vunpack.c.l.b16 %v1173
  %v1466 = vunpack.c.l.b16 %v1174
  %v1467 = vunpack.c.l.b16 %v1175
  %v1468 = vunpack.c.l.b16 %v1176
  %v1469 = vunpack.c.l.b16 %v1177
  %v1470 = vunpack.c.l.b16 %v1178
  %v1471 = vunpack.c.l.b16 %v1179
  %v1472 = vunpack.c.l.b16 %v1180
  %v1473 = vunpack.c.l.b16 %v1181
  %v1474 = vunpack.c.l.b16 %v1182
  %v1475 = vunpack.c.l.b16 %v1183
  %v1476 = vunpack.c.l.b16 %v1184
  %v1477 = vunpack.c.l.b16 %v1185
  %v1478 = vunpack.c.l.b16 %v1186
  %v1479 = vunpack.c.l.b16 %v1187
  %v1480 = vunpack.c.l.b16 %v1188
  %v1481 = vunpack.c.l.b16 %v1189
  %v1482 = vunpack.c.l.b16 %v1190
  %v1483 = vunpack.c.l.b16 %v1191
  %v1484 = vunpack.c.l.b16 %v1192
  %v1485 = vunpack.c.l.b16 %v1193
  %v1486 = vunpack.c.l.b16 %v1194
  %v1487 = vunpack.c.l.b16 %v1195
  %v1488 = vunpack.c.l.b16 %v1196
  %v1489 = vunpack.c.l.b16 %v1197
  %v1490 = vpack.c.b16 %v1443, %v1442
  %v1491 = vpack.c.b16 %v1445, %v1444
  %v1492 = vpack.c.b16 %v1447, %v1446
  %v1493 = vpack.c.b16 %v1449, %v1448
  %v1494 = vpack.c.b16 %v1451, %v1450
  %v1495 = vpack.c.b16 %v1453, %v1452
  %v1496 = vpack.c.b16 %v1455, %v1454
  %v1497 = vpack.c.b16 %v1457, %v1456
  %v1498 = vpack.c.b16 %v1459, %v1458
  %v1499 = vpack.c.b16 %v1461, %v1460
  %v1500 = vpack.c.b16 %v1463, %v1462
  %v1501 = vpack.c.b16 %v1465, %v1464
  %v1502 = vpack.c.b16 %v1467, %v1466
  %v1503 = vpack.c.b16 %v1469, %v1468
  %v1504 = vpack.c.b16 %v1471, %v1470
  %v1505 = vpack.c.b16 %v1473, %v1472
  %v1506 = vpack.c.b16 %v1475, %v1474
  %v1507 = vpack.c.b16 %v1477, %v1476
  %v1508 = vpack.c.b16 %v1479, %v1478
  %v1509 = vpack.c.b16 %v1481, %v1480
  %v1510 = vpack.c.b16 %v1483, %v1482
  %v1511 = vpack.c.b16 %v1485, %v1484
  %v1512 = vpack.c.b16 %v1487, %v1486
  %v1513 = vpack.c.b16 %v1489, %v1488
  %1538 = vmatprep.subr.bf16.mxu0 0
  %1539 = vmatpush1.bf16.msra.mxu0 %v1490
  %1540 = vmatprep.subr.bf16.mxu0 0
  %1541 = vmatpush1.bf16.msra.mxu0 %v1491
  %1542 = vmatprep.subr.bf16.mxu0 0
  %1543 = vmatpush1.bf16.msra.mxu0 %v1492
  %1544 = vmatprep.subr.bf16.mxu0 0
  %1545 = vmatpush1.bf16.msra.mxu0 %v1493
  %1546 = vmatprep.subr.bf16.mxu0 0
  %1547 = vmatpush1.bf16.msra.mxu0 %v1494
  %1548 = vmatprep.subr.bf16.mxu0 0
  %1549 = vmatpush1.bf16.msra.mxu0 %v1495
  %1550 = vmatprep.subr.bf16.mxu0 0
  %1551 = vmatpush1.bf16.msra.mxu0 %v1496
  %1552 = vmatprep.subr.bf16.mxu0 0
  %1553 = vmatpush1.bf16.msra.mxu0 %v1497
  %1554 = vmatprep.subr.bf16.mxu0 0
  %1555 = vmatpush1.bf16.msra.mxu0 %v1498
  %1556 = vmatprep.subr.bf16.mxu0 0
  %1557 = vmatpush1.bf16.msra.mxu0 %v1499
  %1558 = vmatprep.subr.bf16.mxu0 0
  %1559 = vmatpush1.bf16.msra.mxu0 %v1500
  %1560 = vmatprep.subr.bf16.mxu0 0
  %1561 = vmatpush1.bf16.msra.mxu0 %v1501
  %1562 = vmatprep.subr.bf16.mxu0 0
  %1563 = vmatpush1.bf16.msra.mxu0 %v1502
  %1564 = vmatprep.subr.bf16.mxu0 0
  %1565 = vmatpush1.bf16.msra.mxu0 %v1503
  %1566 = vmatprep.subr.bf16.mxu0 0
  %1567 = vmatpush1.bf16.msra.mxu0 %v1504
  %1568 = vmatprep.subr.bf16.mxu0 0
  %1569 = vmatpush1.bf16.msra.mxu0 %v1505
  %1570 = vmatprep.mubr.bf16.mxu0 %v1297
  %1571 = vmatmul.mubr.bf16.gmra.mrb[0].mxu0 %v1285
  %v1572 = vpop.f32.mrb[0].mxu0
  %v1573 = vadd.f32 %v1272, %v1572
  %v1574 = vpop.f32.mrb[0].mxu0
  %v1575 = vpop.f32.mrb[0].mxu0
  %v1576 = vadd.f32 %v1272, %v1575
  %v1577 = vpop.f32.mrb[0].mxu0
  %1578 = vmatprep.mubr.bf16.mxu0 %v1325
  %1579 = vmatmul.mubr.bf16.gmra.mrb[0].mxu0 %v1317
  %v1580 = vpop.f32.mrb[0].mxu0
  %v1581 = vadd.f32 %v1272, %v1580
  %v1582 = vpop.f32.mrb[0].mxu0
  %v1583 = vpop.f32.mrb[0].mxu0
  %v1584 = vadd.f32 %v1272, %v1583
  %v1585 = vpop.f32.mrb[0].mxu0
  %1586 = vmatprep.mubr.bf16.mxu0 %v1349
  %1587 = vmatmul.mubr.bf16.gmra.mrb[0].mxu0 %v1341
  %v1588 = vpop.f32.mrb[0].mxu0
  %v1589 = vadd.f32 %v1272, %v1588
  %v1590 = vpop.f32.mrb[0].mxu0
  %v1591 = vpop.f32.mrb[0].mxu0
  %v1592 = vadd.f32 %v1272, %v1591
  %v1593 = vpop.f32.mrb[0].mxu0
  %1594 = vmatprep.mubr.bf16.mxu0 %v1373
  %1595 = vmatmul.mubr.bf16.gmra.mrb[0].mxu0 %v1365
  %v1596 = vpop.f32.mrb[0].mxu0
  %v1597 = vadd.f32 %v1272, %v1596
  %v1598 = vpop.f32.mrb[0].mxu0
  %v1599 = vpop.f32.mrb[0].mxu0
  %v1600 = vadd.f32 %v1272, %v1599
  %v1601 = vpop.f32.mrb[0].mxu0
  %1602 = vdwg.mxu0
  %1603 = vmatprep.subr.bf16.mxu0 0
  %1604 = vmatpush1.bf16.msra.mxu0 %v1506
  %1605 = vmatprep.subr.bf16.mxu0 0
  %1606 = vmatpush1.bf16.msra.mxu0 %v1507
  %1607 = vmatprep.subr.bf16.mxu0 0
  %1608 = vmatpush1.bf16.msra.mxu0 %v1508
  %1609 = vmatprep.subr.bf16.mxu0 0
  %1610 = vmatpush1.bf16.msra.mxu0 %v1509
  %1611 = vmatprep.subr.bf16.mxu0 0
  %1612 = vmatpush1.bf16.msra.mxu0 %v1510
  %1613 = vmatprep.subr.bf16.mxu0 0
  %1614 = vmatpush1.bf16.msra.mxu0 %v1511
  %1615 = vmatprep.subr.bf16.mxu0 0
  %1616 = vmatpush1.bf16.msra.mxu0 %v1512
  %1617 = vmatprep.subr.bf16.mxu0 0
  %1618 = vmatpush1.bf16.msra.mxu0 %v1513
  %1619 = vmatprep.subr.bf16.mxu0 0
  %1620 = vmatpush1.bf16.msra.mxu0 0
  %1621 = vmatprep.subr.bf16.mxu0 0
  %1622 = vmatpush1.bf16.msra.mxu0 0
  %1623 = vmatprep.subr.bf16.mxu0 0
  %1624 = vmatpush1.bf16.msra.mxu0 0
  %1625 = vmatprep.subr.bf16.mxu0 0
  %1626 = vmatpush1.bf16.msra.mxu0 0
  %1627 = vmatprep.subr.bf16.mxu0 0
  %1628 = vmatpush1.bf16.msra.mxu0 0
  %1629 = vmatprep.subr.bf16.mxu0 0
  %1630 = vmatpush1.bf16.msra.mxu0 0
  %1631 = vmatprep.subr.bf16.mxu0 0
  %1632 = vmatpush1.bf16.msra.mxu0 0
  %1633 = vmatprep.subr.bf16.mxu0 0
  %1634 = vmatpush1.bf16.msra.mxu0 0
  %1635 = vmatprep.mubr.bf16.mxu0 0
  %1636 = vmatmul.mubr.bf16.gmra.mrb[0].mxu0 %v1309
  %v1637 = vpop.f32.mrb[0].mxu0
  %v1638 = vadd.f32 %v1573, %v1637
  %v1639 = vpop.f32.mrb[0].mxu0
  %v1640 = vpop.f32.mrb[0].mxu0
  %v1641 = vadd.f32 %v1576, %v1640
  %v1642 = vpop.f32.mrb[0].mxu0
  %1643 = vmatprep.mubr.bf16.mxu0 0
  %1644 = vmatmul.mubr.bf16.gmra.mrb[0].mxu0 %v1333
  %v1645 = vpop.f32.mrb[0].mxu0
  %v1646 = vadd.f32 %v1581, %v1645
  %v1647 = vpop.f32.mrb[0].mxu0
  %v1648 = vpop.f32.mrb[0].mxu0
  %v1649 = vadd.f32 %v1584, %v1648
  %v1650 = vpop.f32.mrb[0].mxu0
  %1651 = vmatprep.mubr.bf16.mxu0 0
  %1652 = vmatmul.mubr.bf16.gmra.mrb[0].mxu0 %v1357
  %v1653 = vpop.f32.mrb[0].mxu0
  %v1654 = vadd.f32 %v1589, %v1653
  %v1655 = vpop.f32.mrb[0].mxu0
  %v1656 = vpop.f32.mrb[0].mxu0
  %v1657 = vadd.f32 %v1592, %v1656
  %v1658 = vpop.f32.mrb[0].mxu0
  %1659 = vmatprep.mubr.bf16.mxu0 0
  %1660 = vmatmul.mubr.bf16.gmra.mrb[0].mxu0 %v1381
  %v1661 = vpop.f32.mrb[0].mxu0
  %v1662 = vadd.f32 %v1597, %v1661
  %v1663 = vpop.f32.mrb[0].mxu0
  %v1664 = vpop.f32.mrb[0].mxu0
  %v1665 = vadd.f32 %v1600, %v1664
  %v1666 = vpop.f32.mrb[0].mxu0
  %1667 = vdwg.mxu0
  %v1668 = vld [vmem:[%s9] sm:$0x1]
  %v1670 = vlaneseq
  %v1671 = vshrl.u32 %v1670, 7
  %v1672 = vsub.s32 0, %v1671
  %v1673 = vrot.slane %v1668, %v1672
  %v1675 = vmul.f32 %v1638, %v1673
  %v1676 = vmul.f32 %v1641, %v1673
  %v1677 = vmul.f32 %v1646, %v1673
  %v1678 = vmul.f32 %v1649, %v1673
  %v1679 = vmul.f32 %v1654, %v1673
  %v1680 = vmul.f32 %v1657, %v1673
  %v1681 = vmul.f32 %v1662, %v1673
  %v1682 = vmul.f32 %v1665, %v1673
  %v1683 = vadd.f32 %v972, %v1675
  %v1684 = vadd.f32 %v975, %v1676
  %v1685 = vadd.f32 %v980, %v1677
  %v1686 = vadd.f32 %v983, %v1678
  %v1687 = vadd.f32 %v988, %v1679
  %v1688 = vadd.f32 %v991, %v1680
  %v1689 = vadd.f32 %v996, %v1681
  %v1690 = vadd.f32 %v999, %v1682
  %1691 = vst.msk [vmem:[#allocation3] sm:$0xff] %vm1004, %v1683
  %1692 = vst.msk [vmem:[#allocation3 + $0x8] sm:$0xff] %vm1004, %v1684
  %1693 = vst.msk [vmem:[#allocation3 + $0x10] sm:$0xff] %vm1004, %v1685
  %1694 = vst.msk [vmem:[#allocation3 + $0x18] sm:$0xff] %vm1004, %v1686
  %1695 = vst.msk [vmem:[#allocation3 + $0x20] sm:$0xff] %vm1004, %v1687
  %1696 = vst.msk [vmem:[#allocation3 + $0x28] sm:$0xff] %vm1004, %v1688
  %1697 = vst.msk [vmem:[#allocation3 + $0x30] sm:$0xff] %vm1004, %v1689
  %1698 = vst.msk [vmem:[#allocation3 + $0x38] sm:$0xff] %vm1004, %v1690
  %v1699 = vld [vmem:[#allocation3] ss:$2 sm:$0xff]
  %s1700 = scalar_lea.vmem [#allocation3], 16
  %v1701 = vld [vmem:[%s1700] ss:$2 sm:$0xff]
  %s1702 = scalar_lea.vmem [#allocation3], 32
  %v1703 = vld [vmem:[%s1702] ss:$2 sm:$0xff]
  %s1704 = scalar_lea.vmem [#allocation3], 48
  %v1705 = vld [vmem:[%s1704] ss:$2 sm:$0xff]
  %s1706 = scalar_lea.vmem [#allocation3], 1
  %v1707 = vld [vmem:[%s1706] ss:$2 sm:$0xff]
  %s1708 = scalar_lea.vmem [#allocation3], 17
  %v1709 = vld [vmem:[%s1708] ss:$2 sm:$0xff]
  %s1710 = scalar_lea.vmem [#allocation3], 33
  %v1711 = vld [vmem:[%s1710] ss:$2 sm:$0xff]
  %s1712 = scalar_lea.vmem [#allocation3], 49
  %v1713 = vld [vmem:[%s1712] ss:$2 sm:$0xff]
  %v1714 = vmax.f32 %v1699, %v1707
  %v1715 = vmax.f32 %v1701, %v1709
  %v1716 = vmax.f32 %v1703, %v1711
  %v1717 = vmax.f32 %v1705, %v1713
  %1718 = vst.msk [vmem:[%s10] sm:$0xff] %vm1004, %v1714
  %1719 = vst.msk [vmem:[%s10 + $0x8] sm:$0xff] %vm1004, %v1715
  %1720 = vst.msk [vmem:[%s10 + $0x10] sm:$0xff] %vm1004, %v1716
  %1721 = vst.msk [vmem:[%s10 + $0x18] sm:$0xff] %vm1004, %v1717
  // Predicated region
  $region42: #{tpu_custom_call.1} parent=0 // pred_check
    _
  $region43: #{tpu_custom_call.1} parent=0 // pred_check_branch
    %1723 = sbr.rel (0) target = $region45
  $region44: #{tpu_custom_call.1} parent=0 // pred_region
    _
  $region45: #{tpu_custom_call.1} parent=0 // pred_fallthru
    _
  // Predicated region
  $region46: #{tpu_custom_call.1} parent=0 // pred_check
    _
  $region47: #{tpu_custom_call.1} parent=0 // pred_check_branch
    %1725 = sbr.rel (0) target = $region49
  $region48: #{tpu_custom_call.1} parent=0 // pred_region
    _
  $region49: #{tpu_custom_call.1} parent=0 // pred_fallthru
    _

</llo_original>
